<compile_context>
chip_gen: v5e
topology: v5e:2x2
jax: 0.10.0
libtpu: 0.0.40
codegen_flags: <defaults>
</compile_context>

<pallas_src>
import jax
import jax.numpy as jnp
from jax.experimental import pallas as pl
from jax.experimental.pallas import tpu as pltpu

LANE = 128


# ----------------------------------------------------------------------------
# Fused kernel: FE matmul accumulation over K, then (on the last K step)
# ELMES token build + pre-LN encoder layer + head, all in VMEM.
# ----------------------------------------------------------------------------
def _make_caml_kernel(ns):
    f32 = jnp.float32
    bf16 = jnp.bfloat16

    def ln(z, g, b):
        # one-pass LayerNorm; variance clamped to >= 0 (review fix).
        mu = jnp.mean(z, axis=-1, keepdims=True)
        var = jnp.maximum(jnp.mean(z * z, axis=-1, keepdims=True) - mu * mu, 0.0)
        return (z - mu) * jax.lax.rsqrt(var + 1e-5) * g + b

    def kernel(x_ref, wfe_ref, tokb_ref, wqkv_ref, wo_ref,
               g1_ref, b1_ref, w1_ref, w2_ref, g2_ref, b2_ref,
               wh_ref, bh_ref, o_ref, tok_acc):
        k = pl.program_id(0)

        @pl.when(k == 0)
        def _():
            tok_acc[...] = jnp.zeros_like(tok_acc)

        # feature extractor: (N_pad, tk) @ (tk, 128), f32 accumulation.
        tok_acc[...] += jnp.dot(x_ref[...], wfe_ref[...],
                                preferred_element_type=f32)

        @pl.when(k == pl.num_programs(0) - 1)
        def _():
            # tokens: features (cols 0..111) + bias + ELMES label emb (112..127)
            tok = tok_acc[...] + tokb_ref[...]              # (Np, 128) f32
            Np, D = tok.shape
            scale = 1.0 / (D ** 0.5)

            # ---- pre-LN self-attention (fused QKV projection) ----
            xn = ln(tok, g1_ref[...], b1_ref[...]).astype(bf16)
            qkv = jnp.dot(xn, wqkv_ref[...], preferred_element_type=f32)
            q = (qkv[:, :D] * scale).astype(bf16)
            kk = qkv[:, D:2 * D].astype(bf16)
            v = qkv[:, 2 * D:3 * D].astype(bf16)

            # scores via dot_general (no XLU transpose): (Np, Np)
            s = jax.lax.dot_general(q, kk, (((1,), (1,)), ((), ())),
                                    preferred_element_type=f32)
            # each row attends to {support tokens} U {itself}
            rows = jax.lax.broadcasted_iota(jnp.int32, (Np, Np), 0)
            cols = jax.lax.broadcasted_iota(jnp.int32, (Np, Np), 1)
            allowed = (cols < ns) | (cols == rows)
            s = jnp.where(allowed, s, -1e30)

            m = jnp.max(s, axis=-1, keepdims=True)
            p = jnp.exp(s - m)
            inv = pl.reciprocal(jnp.sum(p, axis=-1, keepdims=True), approx=True)
            att = jnp.dot(p.astype(bf16), v, preferred_element_type=f32) * inv

            x = tok + jnp.dot(att.astype(bf16), wo_ref[...],
                              preferred_element_type=f32)

            # ---- pre-LN MLP ----
            yn = ln(x, g2_ref[...], b2_ref[...]).astype(bf16)
            h = jnp.maximum(
                jnp.dot(yn, w1_ref[...], preferred_element_type=f32), 0.0)
            x = x + jnp.dot(h.astype(bf16), w2_ref[...],
                            preferred_element_type=f32)

            # ---- classification head (lane-padded to 128) ----
            logits = jnp.dot(x.astype(bf16), wh_ref[...],
                             preferred_element_type=f32) + bh_ref[...]
            o_ref[...] = logits.astype(o_ref.dtype)

    return kernel


def caml_fused_pallas(x, tok_bias, prep, *, ns, tk):
    n_pad, K_pad = x.shape
    D = tok_bias.shape[1]
    d_ff = prep["w1"].shape[1]
    way_pad = prep["wh_pad"].shape[1]

    def const(shape):
        return pl.BlockSpec(shape, lambda k: (0, 0))

    return pl.pallas_call(
        _make_caml_kernel(ns),
        out_shape=jax.ShapeDtypeStruct((n_pad, way_pad), jnp.float32),
        grid=(K_pad // tk,),
        in_specs=[
            pl.BlockSpec((n_pad, tk), lambda k: (0, k)),    # x: tiled over K
            pl.BlockSpec((tk, D), lambda k: (k, 0)),        # w_fe: tiled over K
            const((n_pad, D)),                              # token bias + ELMES
            const((D, 3 * D)),                              # fused [wq|wk|wv]
            const((D, D)),                                  # wo
            const((1, D)), const((1, D)),                   # g1, b1
            const((D, d_ff)), const((d_ff, D)),             # w1, w2
            const((1, D)), const((1, D)),                   # g2, b2
            const((D, way_pad)), const((1, way_pad)),       # wh_pad, bh_pad
        ],
        out_specs=pl.BlockSpec((n_pad, way_pad), lambda k: (0, 0)),
        scratch_shapes=[pltpu.VMEM((n_pad, D), jnp.float32)],
        compiler_params=pltpu.CompilerParams(
            dimension_semantics=("arbitrary",)),
    )(x, prep["w_fe_pad"], tok_bias,
      prep["w_qkv"], prep["wo"],
      prep["g1"], prep["b1"], prep["w1"], prep["w2"], prep["g2"], prep["b2"],
      prep["wh_pad"], prep["bh_pad"])


# ----------------------------------------------------------------------------
# One-time parameter preparation (hoisted out of the forward path).
# ----------------------------------------------------------------------------
def prepare_params(p, way):
    bf16 = jnp.bfloat16
    in_dim, fe_dim = p["w_fe"].shape
    label_dim = p["elmes"].shape[1]
    D = fe_dim + label_dim
    assert D == LANE, "demo assumes lane-aligned model dim (fe_dim+label_dim=128)"

    # FE contraction tiling: K padded to a multiple of 512, tk >= 512.
    K_pad = ((in_dim + 511) // 512) * 512
    tk = 1024 if K_pad % 1024 == 0 else 512

    w_fe_pad = (jnp.zeros((K_pad, LANE), jnp.float32)
                .at[:in_dim, :fe_dim].set(p["w_fe"]).astype(bf16))
    b_fe_pad = jnp.zeros((1, LANE), jnp.float32).at[:, :fe_dim].set(p["b_fe"])
    elmes_pad = (jnp.zeros((way + 1, LANE), jnp.float32)
                 .at[:, fe_dim:fe_dim + label_dim].set(p["elmes"]))

    w_qkv = jnp.concatenate([p["wq"], p["wk"], p["wv"]], axis=1).astype(bf16)
    wh_pad = (jnp.zeros((D, LANE), jnp.float32)
              .at[:, :way].set(p["wh"]).astype(bf16))
    bh_pad = jnp.zeros((1, LANE), jnp.float32).at[:, :way].set(p["bh"])

    return {
        "w_fe_pad": w_fe_pad, "b_fe_pad": b_fe_pad, "elmes_pad": elmes_pad,
        "w_qkv": w_qkv, "wo": p["wo"].astype(bf16),
        "g1": p["g1"], "b1": p["b1"], "g2": p["g2"], "b2": p["b2"],
        "w1": p["w1"].astype(bf16), "w2": p["w2"].astype(bf16),
        "wh_pad": wh_pad, "bh_pad": bh_pad,
        "tk": tk, "in_dim": in_dim, "fe_dim": fe_dim,
    }


# ----------------------------------------------------------------------------
# CAML.forward equivalent
# ----------------------------------------------------------------------------
def caml_forward(inp, labels, way, shot, prep):
    """inp: (way*shot + num_query, C, H, W) NCHW.  Returns (num_query, way)."""
    bf16 = jnp.bfloat16
    N = inp.shape[0]
    ns = way * shot
    nq = N - ns

    # get_feature_vector: cast to fe_dtype (bf16) for the frozen extractor.
    x = inp.reshape(N, -1).astype(bf16)
    K_pad = prep["w_fe_pad"].shape[0]
    n_pad = ((N + 7) // 8) * 8
    x = jnp.pad(x, ((0, n_pad - N), (0, K_pad - x.shape[1])))

    # ELMES label tokens: supports get their class embedding, queries (and pad
    # rows) get the "unknown" row `way` (zeros).  Delivered to the kernel as a
    # single (n_pad, 128) bias slab added to the FE accumulator.
    label_idx = jnp.concatenate(
        [labels.astype(jnp.int32),
         jnp.full((n_pad - ns,), way, jnp.int32)])
    tok_bias = prep["b_fe_pad"] + prep["elmes_pad"][label_idx]

    logits_pad = caml_fused_pallas(x, tok_bias, prep, ns=ns, tk=prep["tk"])
    return logits_pad[ns:ns + nq, :way]


# ----------------------------------------------------------------------------
# Deterministic (raw) parameter construction
# ----------------------------------------------------------------------------
def make_params(key, in_dim, fe_dim, label_dim, way, d_ff):
    D = fe_dim + label_dim
    ks = jax.random.split(key, 10)
    scale = lambda fan_in: 1.0 / jnp.sqrt(jnp.float32(fan_in))
    params = {
        "w_fe": jax.random.normal(ks[0], (in_dim, fe_dim), jnp.float32) * scale(in_dim),
        "b_fe": jnp.zeros((1, fe_dim), jnp.float32),
        "wq": jax.random.normal(ks[1], (D, D), jnp.float32) * scale(D),
        "wk": jax.random.normal(ks[2], (D, D), jnp.float32) * scale(D),
        "wv": jax.random.normal(ks[3], (D, D), jnp.float32) * scale(D),
        "wo": jax.random.normal(ks[4], (D, D), jnp.float32) * scale(D),
        "g1": jnp.ones((1, D), jnp.float32),
        "b1": jnp.zeros((1, D), jnp.float32),
        "w1": jax.random.normal(ks[5], (D, d_ff), jnp.float32) * scale(D),
        "w2": jax.random.normal(ks[6], (d_ff, D), jnp.float32) * scale(d_ff),
        "g2": jnp.ones((1, D), jnp.float32),
        "b2": jnp.zeros((1, D), jnp.float32),
        "wh": jax.random.normal(ks[7], (D, way), jnp.float32) * scale(D),
        "bh": jnp.zeros((1, way), jnp.float32),
    }
    # ELMES-style label embedding: simplex equiangular frame for `way` classes,
    # padded to label_dim; row `way` (the query / unknown label) is zeros.
    simplex = (jnp.eye(way) - 1.0 / way) * jnp.sqrt(way / (way - 1.0))
    elmes = jnp.zeros((way + 1, label_dim), jnp.float32)
    elmes = elmes.at[:way, :way].set(simplex)
    params["elmes"] = elmes
    return params


if __name__ == "__main__":
    key = jax.random.PRNGKey(0)

    # 5-way 1-shot episode with 3 query images; D = 112 + 16 = 128 (lane-aligned).
    way, shot, num_query = 5, 1, 3
    C, H, W = 4, 16, 16
    fe_dim, label_dim, d_ff = 112, 16, 256
    N = way * shot + num_query

    k_inp, k_par = jax.random.split(key)
    inp = jax.random.normal(k_inp, (N, C, H, W), jnp.float32)        # NCHW
    labels = jnp.array([i // shot for i in range(way * shot)], jnp.int32)

    raw_params = make_params(k_par, C * H * W, fe_dim, label_dim, way, d_ff)
    prep = prepare_params(raw_params, way)     # one-time weight prep (hoisted)

    logits = caml_forward(inp, labels, way, shot, prep)
    logits = jax.block_until_ready(logits)

    assert logits.shape == (num_query, way), logits.shape
    assert bool(jnp.all(jnp.isfinite(logits)))
    print("KERNEL_OK")
</pallas_src>

<mosaic_0001>
module attributes {stable_mosaic.version = 11 : i64} {
  func.func @kernel(%arg0: i32, %arg1: memref<8x1024xbf16, #tpu.memory_space<vmem>>, %arg2: memref<1024x128xbf16, #tpu.memory_space<vmem>>, %arg3: memref<8x128xf32, #tpu.memory_space<vmem>>, %arg4: memref<128x384xbf16, #tpu.memory_space<vmem>>, %arg5: memref<128x128xbf16, #tpu.memory_space<vmem>>, %arg6: memref<1x128xf32, #tpu.memory_space<vmem>>, %arg7: memref<1x128xf32, #tpu.memory_space<vmem>>, %arg8: memref<128x256xbf16, #tpu.memory_space<vmem>>, %arg9: memref<256x128xbf16, #tpu.memory_space<vmem>>, %arg10: memref<1x128xf32, #tpu.memory_space<vmem>>, %arg11: memref<1x128xf32, #tpu.memory_space<vmem>>, %arg12: memref<128x128xbf16, #tpu.memory_space<vmem>>, %arg13: memref<1x128xf32, #tpu.memory_space<vmem>>, %arg14: memref<8x128xf32, #tpu.memory_space<vmem>>, %arg15: memref<8x128xf32, #tpu.memory_space<vmem>>) attributes {dimension_semantics = [#tpu.dimension_semantics<arbitrary>], iteration_bounds = array<i64: 1>, scalar_prefetch = 0 : i64, scratch_operands = 1 : i64, tpu.core_type = #tpu.core_type<tc>, window_params = [{transform_indices = @transform_0, window_bounds = array<i64: 8, 1024>}, {transform_indices = @transform_1, window_bounds = array<i64: 1024, 128>}, {pipeline_mode = #tpu.pipeline_mode<synchronous>, transform_indices = @transform_2, window_bounds = array<i64: 8, 128>}, {pipeline_mode = #tpu.pipeline_mode<synchronous>, transform_indices = @transform_3, window_bounds = array<i64: 128, 384>}, {pipeline_mode = #tpu.pipeline_mode<synchronous>, transform_indices = @transform_4, window_bounds = array<i64: 128, 128>}, {pipeline_mode = #tpu.pipeline_mode<synchronous>, transform_indices = @transform_5, window_bounds = array<i64: 1, 128>}, {pipeline_mode = #tpu.pipeline_mode<synchronous>, transform_indices = @transform_6, window_bounds = array<i64: 1, 128>}, {pipeline_mode = #tpu.pipeline_mode<synchronous>, transform_indices = @transform_7, window_bounds = array<i64: 128, 256>}, {pipeline_mode = #tpu.pipeline_mode<synchronous>, transform_indices = @transform_8, window_bounds = array<i64: 256, 128>}, {pipeline_mode = #tpu.pipeline_mode<synchronous>, transform_indices = @transform_9, window_bounds = array<i64: 1, 128>}, {pipeline_mode = #tpu.pipeline_mode<synchronous>, transform_indices = @transform_10, window_bounds = array<i64: 1, 128>}, {pipeline_mode = #tpu.pipeline_mode<synchronous>, transform_indices = @transform_11, window_bounds = array<i64: 128, 128>}, {pipeline_mode = #tpu.pipeline_mode<synchronous>, transform_indices = @transform_12, window_bounds = array<i64: 1, 128>}, {pipeline_mode = #tpu.pipeline_mode<synchronous>, transform_indices = @transform_13, window_bounds = array<i64: 8, 128>}]} {
    %c0_i32 = arith.constant 0 : i32
    %0 = arith.cmpi eq, %arg0, %c0_i32 : i32
    %1 = arith.extui %0 : i1 to i32
    %c0_i32_0 = arith.constant 0 : i32
    %2 = arith.cmpi ne, %1, %c0_i32_0 : i32
    scf.if %2 {
      %cst_10 = arith.constant 0.000000e+00 : f32
      %12 = vector.broadcast %cst_10 : f32 to vector<8x128xf32>
      %c0_11 = arith.constant 0 : index
      %c0_12 = arith.constant 0 : index
      %13 = vector.load %arg15[%c0_11, %c0_12] : memref<8x128xf32, #tpu.memory_space<vmem>>, vector<8x128xf32>
      tpu.vector_store %arg15[%c0_11, %c0_12], %12 {strides = array<i32>} : memref<8x128xf32, #tpu.memory_space<vmem>>, vector<8x128xf32>,
    } else {
    }
    %c0 = arith.constant 0 : index
    %c0_1 = arith.constant 0 : index
    %3 = vector.load %arg15[%c0, %c0_1] : memref<8x128xf32, #tpu.memory_space<vmem>>, vector<8x128xf32>
    %c0_2 = arith.constant 0 : index
    %c0_3 = arith.constant 0 : index
    %4 = vector.load %arg1[%c0_2, %c0_3] : memref<8x1024xbf16, #tpu.memory_space<vmem>>, vector<8x1024xbf16>
    %c0_4 = arith.constant 0 : index
    %c0_5 = arith.constant 0 : index
    %5 = vector.load %arg2[%c0_4, %c0_5] : memref<1024x128xbf16, #tpu.memory_space<vmem>>, vector<1024x128xbf16>
    %cst = arith.constant dense<0.000000e+00> : vector<8x128xf32>
    %6 = tpu.matmul %4, %5, %cst {dimension_numbers = #tpu.dot_dimension_numbers<[1], [0], [0], [1], [0, 0, 1, 1], [], []>} : vector<8x1024xbf16>, vector<1024x128xbf16>, vector<8x128xf32> -> vector<8x128xf32>
    %7 = arith.addf %3, %6 : vector<8x128xf32>
    %c0_6 = arith.constant 0 : index
    %c0_7 = arith.constant 0 : index
    %8 = vector.load %arg15[%c0_6, %c0_7] : memref<8x128xf32, #tpu.memory_space<vmem>>, vector<8x128xf32>
    tpu.vector_store %arg15[%c0_6, %c0_7], %7 {strides = array<i32>} : memref<8x128xf32, #tpu.memory_space<vmem>>, vector<8x128xf32>,
    %c0_i32_8 = arith.constant 0 : i32
    %9 = arith.cmpi eq, %arg0, %c0_i32_8 : i32
    %10 = arith.extui %9 : i1 to i32
    %c0_i32_9 = arith.constant 0 : i32
    %11 = arith.cmpi ne, %10, %c0_i32_9 : i32
    scf.if %11 {
      %c0_10 = arith.constant 0 : index
      %c0_11 = arith.constant 0 : index
      %12 = vector.load %arg15[%c0_10, %c0_11] : memref<8x128xf32, #tpu.memory_space<vmem>>, vector<8x128xf32>
      %c0_12 = arith.constant 0 : index
      %c0_13 = arith.constant 0 : index
      %13 = vector.load %arg3[%c0_12, %c0_13] : memref<8x128xf32, #tpu.memory_space<vmem>>, vector<8x128xf32>
      %14 = arith.addf %12, %13 : vector<8x128xf32>
      %c0_14 = arith.constant 0 : index
      %c0_15 = arith.constant 0 : index
      %15 = vector.load %arg6[%c0_14, %c0_15] : memref<1x128xf32, #tpu.memory_space<vmem>>, vector<1x128xf32>
      %c0_16 = arith.constant 0 : index
      %c0_17 = arith.constant 0 : index
      %16 = vector.load %arg7[%c0_16, %c0_17] : memref<1x128xf32, #tpu.memory_space<vmem>>, vector<1x128xf32>
      %cst_18 = arith.constant dense<0.000000e+00> : vector<8xf32>
      %17 = vector.multi_reduction <add>, %14, %cst_18 [1] : vector<8x128xf32> to vector<8xf32>
      %18 = vector.shape_cast %17 : vector<8xf32> to vector<8x1xf32>
      %cst_19 = arith.constant 1.280000e+02 : f32
      %19 = vector.broadcast %cst_19 : f32 to vector<8x1xf32>
      %20 = arith.divf %18, %19 : vector<8x1xf32>
      %21 = arith.mulf %14, %14 : vector<8x128xf32>
      %cst_20 = arith.constant dense<0.000000e+00> : vector<8xf32>
      %22 = vector.multi_reduction <add>, %21, %cst_20 [1] : vector<8x128xf32> to vector<8xf32>
      %23 = vector.shape_cast %22 : vector<8xf32> to vector<8x1xf32>
      %cst_21 = arith.constant 1.280000e+02 : f32
      %24 = vector.broadcast %cst_21 : f32 to vector<8x1xf32>
      %25 = arith.divf %23, %24 : vector<8x1xf32>
      %26 = arith.mulf %20, %20 : vector<8x1xf32>
      %27 = arith.subf %25, %26 : vector<8x1xf32>
      %cst_22 = arith.constant 0.000000e+00 : f32
      %28 = vector.broadcast %cst_22 : f32 to vector<8x1xf32>
      %29 = arith.maximumf %27, %28 : vector<8x1xf32>
      %30 = vector.broadcast %20 : vector<8x1xf32> to vector<8x128xf32>
      %31 = arith.subf %14, %30 : vector<8x128xf32>
      %cst_23 = arith.constant 9.99999974E-6 : f32
      %32 = vector.broadcast %cst_23 : f32 to vector<8x1xf32>
      %33 = arith.addf %29, %32 : vector<8x1xf32>
      %34 = math.rsqrt %33 : vector<8x1xf32>
      %35 = vector.broadcast %34 : vector<8x1xf32> to vector<8x128xf32>
      %36 = arith.mulf %31, %35 : vector<8x128xf32>
      %37 = vector.broadcast %15 : vector<1x128xf32> to vector<8x128xf32>
      %38 = arith.mulf %36, %37 : vector<8x128xf32>
      %39 = vector.broadcast %16 : vector<1x128xf32> to vector<8x128xf32>
      %40 = arith.addf %38, %39 : vector<8x128xf32>
      %41 = arith.truncf %40 : vector<8x128xf32> to vector<8x128xbf16>
      %c0_24 = arith.constant 0 : index
      %c0_25 = arith.constant 0 : index
      %42 = vector.load %arg4[%c0_24, %c0_25] : memref<128x384xbf16, #tpu.memory_space<vmem>>, vector<128x384xbf16>
      %cst_26 = arith.constant dense<0.000000e+00> : vector<8x384xf32>
      %43 = tpu.matmul %41, %42, %cst_26 {dimension_numbers = #tpu.dot_dimension_numbers<[1], [0], [0], [1], [0, 0, 1, 1], [], []>} : vector<8x128xbf16>, vector<128x384xbf16>, vector<8x384xf32> -> vector<8x384xf32>
      %44 = vector.extract_strided_slice %43 {offsets = [0, 0], sizes = [8, 128], strides = [1, 1]} : vector<8x384xf32> to vector<8x128xf32>
      %cst_27 = arith.constant 0.0883883461 : f32
      %45 = vector.broadcast %cst_27 : f32 to vector<8x128xf32>
      %46 = arith.mulf %44, %45 : vector<8x128xf32>
      %47 = arith.truncf %46 : vector<8x128xf32> to vector<8x128xbf16>
      %48 = vector.extract_strided_slice %43 {offsets = [0, 128], sizes = [8, 128], strides = [1, 1]} : vector<8x384xf32> to vector<8x128xf32>
      %49 = arith.truncf %48 : vector<8x128xf32> to vector<8x128xbf16>
      %50 = vector.extract_strided_slice %43 {offsets = [0, 256], sizes = [8, 128], strides = [1, 1]} : vector<8x384xf32> to vector<8x128xf32>
      %51 = arith.truncf %50 : vector<8x128xf32> to vector<8x128xbf16>
      %cst_28 = arith.constant dense<0.000000e+00> : vector<8x8xf32>
      %52 = tpu.matmul %47, %49, %cst_28 {dimension_numbers = #tpu.dot_dimension_numbers<[1], [1], [0], [0], [0, 0, 1, 0], [], []>} : vector<8x128xbf16>, vector<8x128xbf16>, vector<8x8xf32> -> vector<8x8xf32>
      %53 = tpu.iota {dimensions = array<i32: 0>} : vector<8x8xi32>
      %54 = tpu.iota {dimensions = array<i32: 1>} : vector<8x8xi32>
      %c5_i32 = arith.constant 5 : i32
      %55 = vector.broadcast %c5_i32 : i32 to vector<8x8xi32>
      %56 = arith.cmpi slt, %54, %55 : vector<8x8xi32>
      %57 = arith.cmpi eq, %54, %53 : vector<8x8xi32>
      %58 = arith.ori %56, %57 : vector<8x8xi1>
      %cst_29 = arith.constant -1.000000e+30 : f32
      %59 = vector.broadcast %cst_29 : f32 to vector<8x8xf32>
      %60 = arith.select %58, %52, %59 : vector<8x8xi1>, vector<8x8xf32>
      %cst_30 = arith.constant dense<0xFF800000> : vector<8xf32>
      %61 = vector.multi_reduction <maximumf>, %60, %cst_30 [1] : vector<8x8xf32> to vector<8xf32>
      %62 = vector.shape_cast %61 : vector<8xf32> to vector<8x1xf32>
      %63 = vector.broadcast %62 : vector<8x1xf32> to vector<8x8xf32>
      %64 = arith.subf %60, %63 : vector<8x8xf32>
      %65 = math.exp %64 : vector<8x8xf32>
      %cst_31 = arith.constant dense<0.000000e+00> : vector<8xf32>
      %66 = vector.multi_reduction <add>, %65, %cst_31 [1] : vector<8x8xf32> to vector<8xf32>
      %67 = vector.shape_cast %66 : vector<8xf32> to vector<8x1xf32>
      %68 = tpu.reciprocal %67 {approx = true} : vector<8x1xf32> -> vector<8x1xf32>
      %69 = arith.truncf %65 : vector<8x8xf32> to vector<8x8xbf16>
      %cst_32 = arith.constant dense<0.000000e+00> : vector<8x128xf32>
      %70 = tpu.matmul %69, %51, %cst_32 {dimension_numbers = #tpu.dot_dimension_numbers<[1], [0], [0], [1], [0, 0, 1, 1], [], []>} : vector<8x8xbf16>, vector<8x128xbf16>, vector<8x128xf32> -> vector<8x128xf32>
      %71 = vector.broadcast %68 : vector<8x1xf32> to vector<8x128xf32>
      %72 = arith.mulf %70, %71 : vector<8x128xf32>
      %73 = arith.truncf %72 : vector<8x128xf32> to vector<8x128xbf16>
      %c0_33 = arith.constant 0 : index
      %c0_34 = arith.constant 0 : index
      %74 = vector.load %arg5[%c0_33, %c0_34] : memref<128x128xbf16, #tpu.memory_space<vmem>>, vector<128x128xbf16>
      %cst_35 = arith.constant dense<0.000000e+00> : vector<8x128xf32>
      %75 = tpu.matmul %73, %74, %cst_35 {dimension_numbers = #tpu.dot_dimension_numbers<[1], [0], [0], [1], [0, 0, 1, 1], [], []>} : vector<8x128xbf16>, vector<128x128xbf16>, vector<8x128xf32> -> vector<8x128xf32>
      %76 = arith.addf %14, %75 : vector<8x128xf32>
      %c0_36 = arith.constant 0 : index
      %c0_37 = arith.constant 0 : index
      %77 = vector.load %arg10[%c0_36, %c0_37] : memref<1x128xf32, #tpu.memory_space<vmem>>, vector<1x128xf32>
      %c0_38 = arith.constant 0 : index
      %c0_39 = arith.constant 0 : index
      %78 = vector.load %arg11[%c0_38, %c0_39] : memref<1x128xf32, #tpu.memory_space<vmem>>, vector<1x128xf32>
      %cst_40 = arith.constant dense<0.000000e+00> : vector<8xf32>
      %79 = vector.multi_reduction <add>, %76, %cst_40 [1] : vector<8x128xf32> to vector<8xf32>
      %80 = vector.shape_cast %79 : vector<8xf32> to vector<8x1xf32>
      %cst_41 = arith.constant 1.280000e+02 : f32
      %81 = vector.broadcast %cst_41 : f32 to vector<8x1xf32>
      %82 = arith.divf %80, %81 : vector<8x1xf32>
      %83 = arith.mulf %76, %76 : vector<8x128xf32>
      %cst_42 = arith.constant dense<0.000000e+00> : vector<8xf32>
      %84 = vector.multi_reduction <add>, %83, %cst_42 [1] : vector<8x128xf32> to vector<8xf32>
      %85 = vector.shape_cast %84 : vector<8xf32> to vector<8x1xf32>
      %cst_43 = arith.constant 1.280000e+02 : f32
      %86 = vector.broadcast %cst_43 : f32 to vector<8x1xf32>
      %87 = arith.divf %85, %86 : vector<8x1xf32>
      %88 = arith.mulf %82, %82 : vector<8x1xf32>
      %89 = arith.subf %87, %88 : vector<8x1xf32>
      %cst_44 = arith.constant 0.000000e+00 : f32
      %90 = vector.broadcast %cst_44 : f32 to vector<8x1xf32>
      %91 = arith.maximumf %89, %90 : vector<8x1xf32>
      %92 = vector.broadcast %82 : vector<8x1xf32> to vector<8x128xf32>
      %93 = arith.subf %76, %92 : vector<8x128xf32>
      %cst_45 = arith.constant 9.99999974E-6 : f32
      %94 = vector.broadcast %cst_45 : f32 to vector<8x1xf32>
      %95 = arith.addf %91, %94 : vector<8x1xf32>
      %96 = math.rsqrt %95 : vector<8x1xf32>
      %97 = vector.broadcast %96 : vector<8x1xf32> to vector<8x128xf32>
      %98 = arith.mulf %93, %97 : vector<8x128xf32>
      %99 = vector.broadcast %77 : vector<1x128xf32> to vector<8x128xf32>
      %100 = arith.mulf %98, %99 : vector<8x128xf32>
      %101 = vector.broadcast %78 : vector<1x128xf32> to vector<8x128xf32>
      %102 = arith.addf %100, %101 : vector<8x128xf32>
      %103 = arith.truncf %102 : vector<8x128xf32> to vector<8x128xbf16>
      %c0_46 = arith.constant 0 : index
      %c0_47 = arith.constant 0 : index
      %104 = vector.load %arg8[%c0_46, %c0_47] : memref<128x256xbf16, #tpu.memory_space<vmem>>, vector<128x256xbf16>
      %cst_48 = arith.constant dense<0.000000e+00> : vector<8x256xf32>
      %105 = tpu.matmul %103, %104, %cst_48 {dimension_numbers = #tpu.dot_dimension_numbers<[1], [0], [0], [1], [0, 0, 1, 1], [], []>} : vector<8x128xbf16>, vector<128x256xbf16>, vector<8x256xf32> -> vector<8x256xf32>
      %cst_49 = arith.constant 0.000000e+00 : f32
      %106 = vector.broadcast %cst_49 : f32 to vector<8x256xf32>
      %107 = arith.maximumf %105, %106 : vector<8x256xf32>
      %108 = arith.truncf %107 : vector<8x256xf32> to vector<8x256xbf16>
      %c0_50 = arith.constant 0 : index
      %c0_51 = arith.constant 0 : index
      %109 = vector.load %arg9[%c0_50, %c0_51] : memref<256x128xbf16, #tpu.memory_space<vmem>>, vector<256x128xbf16>
      %cst_52 = arith.constant dense<0.000000e+00> : vector<8x128xf32>
      %110 = tpu.matmul %108, %109, %cst_52 {dimension_numbers = #tpu.dot_dimension_numbers<[1], [0], [0], [1], [0, 0, 1, 1], [], []>} : vector<8x256xbf16>, vector<256x128xbf16>, vector<8x128xf32> -> vector<8x128xf32>
      %111 = arith.addf %76, %110 : vector<8x128xf32>
      %112 = arith.truncf %111 : vector<8x128xf32> to vector<8x128xbf16>
      %c0_53 = arith.constant 0 : index
      %c0_54 = arith.constant 0 : index
      %113 = vector.load %arg12[%c0_53, %c0_54] : memref<128x128xbf16, #tpu.memory_space<vmem>>, vector<128x128xbf16>
      %cst_55 = arith.constant dense<0.000000e+00> : vector<8x128xf32>
      %114 = tpu.matmul %112, %113, %cst_55 {dimension_numbers = #tpu.dot_dimension_numbers<[1], [0], [0], [1], [0, 0, 1, 1], [], []>} : vector<8x128xbf16>, vector<128x128xbf16>, vector<8x128xf32> -> vector<8x128xf32>
      %c0_56 = arith.constant 0 : index
      %c0_57 = arith.constant 0 : index
      %115 = vector.load %arg13[%c0_56, %c0_57] : memref<1x128xf32, #tpu.memory_space<vmem>>, vector<1x128xf32>
      %116 = vector.broadcast %115 : vector<1x128xf32> to vector<8x128xf32>
      %117 = arith.addf %114, %116 : vector<8x128xf32>
      %c0_58 = arith.constant 0 : index
      %c0_59 = arith.constant 0 : index
      %118 = vector.load %arg14[%c0_58, %c0_59] : memref<8x128xf32, #tpu.memory_space<vmem>>, vector<8x128xf32>
      tpu.vector_store %arg14[%c0_58, %c0_59], %117 {strides = array<i32>} : memref<8x128xf32, #tpu.memory_space<vmem>>, vector<8x128xf32>,
    } else {
    }
    return
  }
  func.func @transform_0(%arg0: i32) -> (i32, i32) {
    %c0_i32 = arith.constant 0 : i32
    %c0_i32_0 = arith.constant 0 : i32
    return %c0_i32, %arg0 : i32, i32
  }
  func.func @transform_1(%arg0: i32) -> (i32, i32) {
    %c0_i32 = arith.constant 0 : i32
    %c0_i32_0 = arith.constant 0 : i32
    return %arg0, %c0_i32 : i32, i32
  }
  func.func @transform_2(%arg0: i32) -> (i32, i32) {
    %c0_i32 = arith.constant 0 : i32
    %c0_i32_0 = arith.constant 0 : i32
    %c0_i32_1 = arith.constant 0 : i32
    return %c0_i32, %c0_i32_0 : i32, i32
  }
  func.func @transform_3(%arg0: i32) -> (i32, i32) {
    %c0_i32 = arith.constant 0 : i32
    %c0_i32_0 = arith.constant 0 : i32
    %c0_i32_1 = arith.constant 0 : i32
    return %c0_i32, %c0_i32_0 : i32, i32
  }
  func.func @transform_4(%arg0: i32) -> (i32, i32) {
    %c0_i32 = arith.constant 0 : i32
    %c0_i32_0 = arith.constant 0 : i32
    %c0_i32_1 = arith.constant 0 : i32
    return %c0_i32, %c0_i32_0 : i32, i32
  }
  func.func @transform_5(%arg0: i32) -> (i32, i32) {
    %c0_i32 = arith.constant 0 : i32
    %c0_i32_0 = arith.constant 0 : i32
    %c0_i32_1 = arith.constant 0 : i32
    return %c0_i32, %c0_i32_0 : i32, i32
  }
  func.func @transform_6(%arg0: i32) -> (i32, i32) {
    %c0_i32 = arith.constant 0 : i32
    %c0_i32_0 = arith.constant 0 : i32
    %c0_i32_1 = arith.constant 0 : i32
    return %c0_i32, %c0_i32_0 : i32, i32
  }
  func.func @transform_7(%arg0: i32) -> (i32, i32) {
    %c0_i32 = arith.constant 0 : i32
    %c0_i32_0 = arith.constant 0 : i32
    %c0_i32_1 = arith.constant 0 : i32
    return %c0_i32, %c0_i32_0 : i32, i32
  }
  func.func @transform_8(%arg0: i32) -> (i32, i32) {
    %c0_i32 = arith.constant 0 : i32
    %c0_i32_0 = arith.constant 0 : i32
    %c0_i32_1 = arith.constant 0 : i32
    return %c0_i32, %c0_i32_0 : i32, i32
  }
  func.func @transform_9(%arg0: i32) -> (i32, i32) {
    %c0_i32 = arith.constant 0 : i32
    %c0_i32_0 = arith.constant 0 : i32
    %c0_i32_1 = arith.constant 0 : i32
    return %c0_i32, %c0_i32_0 : i32, i32
  }
  func.func @transform_10(%arg0: i32) -> (i32, i32) {
    %c0_i32 = arith.constant 0 : i32
    %c0_i32_0 = arith.constant 0 : i32
    %c0_i32_1 = arith.constant 0 : i32
    return %c0_i32, %c0_i32_0 : i32, i32
  }
  func.func @transform_11(%arg0: i32) -> (i32, i32) {
    %c0_i32 = arith.constant 0 : i32
    %c0_i32_0 = arith.constant 0 : i32
    %c0_i32_1 = arith.constant 0 : i32
    return %c0_i32, %c0_i32_0 : i32, i32
  }
  func.func @transform_12(%arg0: i32) -> (i32, i32) {
    %c0_i32 = arith.constant 0 : i32
    %c0_i32_0 = arith.constant 0 : i32
    %c0_i32_1 = arith.constant 0 : i32
    return %c0_i32, %c0_i32_0 : i32, i32
  }
  func.func @transform_13(%arg0: i32) -> (i32, i32) {
    %c0_i32 = arith.constant 0 : i32
    %c0_i32_0 = arith.constant 0 : i32
    %c0_i32_1 = arith.constant 0 : i32
    return %c0_i32, %c0_i32_0 : i32, i32
  }
}

</mosaic_0001>

<llo_original>
// kernel: tpu_custom_call.1
$region0: #{tpu_custom_call.1}
  #allocation0 [shape = 'u32[]', space=smem, size = 0x4, offset = 0x4, fixed_abs, tag = 'smem constant byte address 0x4 - core index']
  #allocation1 [shape = 'u32[72,128]{1,0:T(1,128)}', space=vmem, size = 0x9000, scoped, tag = 'internal scratch']
  #allocation2 [shape = 'f32[8,128]{1,0:T(8,128)}', space=vmem, size = 0x1000, scoped, tag = 'scratch operand']
  %s0 = inlined_call_operand.hbm [shape: bf16[8,1024], index: 0, kind: input, shape index: {}]
  %s1 = inlined_call_operand.hbm [shape: bf16[1024,128], index: 1, kind: input, shape index: {}]
  %s2 = inlined_call_operand.hbm [shape: f32[8,128], index: 2, kind: input, shape index: {}]
  %s3 = inlined_call_operand.hbm [shape: bf16[128,384], index: 3, kind: input, shape index: {}]
  %s4 = inlined_call_operand.hbm [shape: bf16[128,128], index: 4, kind: input, shape index: {}]
  %s5 = inlined_call_operand.vmem [shape: f32[1,128], index: 5, kind: input, shape index: {}]
  %s6 = inlined_call_operand.vmem [shape: f32[1,128], index: 6, kind: input, shape index: {}]
  %s7 = inlined_call_operand.hbm [shape: bf16[128,256], index: 7, kind: input, shape index: {}]
  %s8 = inlined_call_operand.hbm [shape: bf16[256,128], index: 8, kind: input, shape index: {}]
  %s9 = inlined_call_operand.vmem [shape: f32[1,128], index: 9, kind: input, shape index: {}]
  %s10 = inlined_call_operand.vmem [shape: f32[1,128], index: 10, kind: input, shape index: {}]
  %s11 = inlined_call_operand.hbm [shape: bf16[128,128], index: 11, kind: input, shape index: {}]
  %s12 = inlined_call_operand.vmem [shape: f32[1,128], index: 12, kind: input, shape index: {}]
  %s13 = inlined_call_operand.hbm [shape: f32[8,128], index: 13, kind: output, shape index: {}]
  %s14 = sld [smem:[#allocation0]]
  $region102: #{tpu_custom_call.1} parent=0
    _
  %s16 = ssub.s32 1, %s14
  %s17 = scalar_select 0, %s16, %s14
  $region1: #{tpu_custom_call.1} parent=0
    #allocation3 [shape = 'u8[16384]{0}', space=vmem, size = 0x4000, scoped, tag = 'input window, operand 0, single buffered']
    #allocation4 [shape = 's32[1]{0}', space=sflag, size = 0x4, scoped, tag = 'scoped memory for tpu_custom_call.1']
    #allocation5 [shape = 's32[1]{0}', space=sflag, size = 0x4, scoped, tag = 'scoped memory for tpu_custom_call.1']
    #allocation6 [shape = 'u8[262144]{0}', space=vmem, size = 0x40000, scoped, tag = 'input window, operand 1, single buffered']
    #allocation7 [shape = 's32[1]{0}', space=sflag, size = 0x4, scoped, tag = 'scoped memory for tpu_custom_call.1']
    #allocation8 [shape = 'u8[4096]{0}', space=vmem, size = 0x1000, scoped, tag = 'input window, operand 2, single buffered']
    #allocation9 [shape = 'u8[98304]{0}', space=vmem, size = 0x18000, scoped, tag = 'input window, operand 3, single buffered']
    #allocation10 [shape = 's32[1]{0}', space=sflag, size = 0x4, scoped, tag = 'scoped memory for tpu_custom_call.1']
    #allocation11 [shape = 'u8[32768]{0}', space=vmem, size = 0x8000, scoped, tag = 'input window, operand 4, single buffered']
    #allocation12 [shape = 'u8[65536]{0}', space=vmem, size = 0x10000, scoped, tag = 'input window, operand 7, single buffered']
    #allocation13 [shape = 's32[1]{0}', space=sflag, size = 0x4, scoped, tag = 'scoped memory for tpu_custom_call.1']
    #allocation14 [shape = 'u8[65536]{0}', space=vmem, size = 0x10000, scoped, tag = 'input window, operand 8, single buffered']
    #allocation15 [shape = 'u8[32768]{0}', space=vmem, size = 0x8000, scoped, tag = 'input window, operand 11, single buffered']
    #allocation16 [shape = 's32[1]{0}', space=sflag, size = 0x4, scoped, tag = 'scoped memory for tpu_custom_call.1']
    #allocation17 [shape = 'u8[4096]{0}', space=vmem, size = 0x1000, scoped, tag = 'output window, operand 0, single buffered']
    %18 = vsyncpa [#allocation4], 0
    %19 = vsyncpa [#allocation7], 0
    %20 = vsyncpa [#allocation10], 0
    %21 = vsyncpa [#allocation13], 0
    %22 = vsyncpa [#allocation16], 0
    %23 = vsyncpa [#allocation5], 0
    // Predicated region
    $region2: #{tpu_custom_call.1} parent=1 // pred_check
      _
    $region3: #{tpu_custom_call.1} parent=1 // pred_check_branch
      %25 = sbr.rel (0) target = $region5
    $region4: #{tpu_custom_call.1} parent=1 // pred_region
      %27 = vsyncadd [#allocation4], 0
      %s29 = sshll.u32 %s0, 4
      %s30 = int_to_ptr.hbm [resolvable:$true] %s29
      %s31 = sshll.u32 [#allocation3], 4
      %s32 = int_to_ptr.vmem [resolvable:$true] %s31
      %34 = dma.hbm_to_vmem [thread:$0]  %s30, 512, %s32, [#allocation4]
    $region5: #{tpu_custom_call.1} parent=1 // pred_fallthru
      _
    // Predicated region
    $region6: #{tpu_custom_call.1} parent=1 // pred_check
      _
    $region7: #{tpu_custom_call.1} parent=1 // pred_check_branch
      %36 = sbr.rel (0) target = $region9
    $region8: #{tpu_custom_call.1} parent=1 // pred_region
      %38 = vsyncadd [#allocation7], 0
      %s39 = sshll.u32 %s1, 4
      %s40 = int_to_ptr.hbm [resolvable:$true] %s39
      %s41 = sshll.u32 [#allocation6], 4
      %s42 = int_to_ptr.vmem [resolvable:$true] %s41
      %47 = dma.hbm_to_vmem [thread:$0]  %s40, 8192, %s42, [#allocation7], 64, 64, 4
    $region9: #{tpu_custom_call.1} parent=1 // pred_fallthru
      _
    // Predicated region
    $region10: #{tpu_custom_call.1} parent=1 // pred_check
      _
    $region11: #{tpu_custom_call.1} parent=1 // pred_check_branch
      %49 = sbr.rel (0) target = $region13
    $region12: #{tpu_custom_call.1} parent=1 // pred_region
      %51 = vsyncadd [#allocation7], 0
      %s53 = sshll.u32 %s2, 4
      %s54 = int_to_ptr.hbm [resolvable:$true] %s53
      %s55 = sshll.u32 [#allocation8], 4
      %s56 = int_to_ptr.vmem [resolvable:$true] %s55
      %58 = dma.hbm_to_vmem [thread:$0]  %s54, 128, %s56, [#allocation7]
    $region13: #{tpu_custom_call.1} parent=1 // pred_fallthru
      _
    // Predicated region
    $region14: #{tpu_custom_call.1} parent=1 // pred_check
      _
    $region15: #{tpu_custom_call.1} parent=1 // pred_check_branch
      %60 = sbr.rel (0) target = $region17
    $region16: #{tpu_custom_call.1} parent=1 // pred_region
      %62 = vsyncadd [#allocation10], 0
      %s63 = sshll.u32 %s3, 4
      %s64 = int_to_ptr.hbm [resolvable:$true] %s63
      %s65 = sshll.u32 [#allocation9], 4
      %s66 = int_to_ptr.vmem [resolvable:$true] %s65
      %71 = dma.hbm_to_vmem [thread:$0]  %s64, 3072, %s66, [#allocation10], 192, 192, 12
    $region17: #{tpu_custom_call.1} parent=1 // pred_fallthru
      _
    // Predicated region
    $region18: #{tpu_custom_call.1} parent=1 // pred_check
      _
    $region19: #{tpu_custom_call.1} parent=1 // pred_check_branch
      %73 = sbr.rel (0) target = $region21
    $region20: #{tpu_custom_call.1} parent=1 // pred_region
      %75 = vsyncadd [#allocation10], 0
      %s76 = sshll.u32 %s4, 4
      %s77 = int_to_ptr.hbm [resolvable:$true] %s76
      %s78 = sshll.u32 [#allocation11], 4
      %s79 = int_to_ptr.vmem [resolvable:$true] %s78
      %84 = dma.hbm_to_vmem [thread:$0]  %s77, 1024, %s79, [#allocation10], 64, 64, 4
    $region21: #{tpu_custom_call.1} parent=1 // pred_fallthru
      _
    // Predicated region
    $region22: #{tpu_custom_call.1} parent=1 // pred_check
      _
    $region23: #{tpu_custom_call.1} parent=1 // pred_check_branch
      %86 = sbr.rel (0) target = $region25
    $region24: #{tpu_custom_call.1} parent=1 // pred_region
      _
    $region25: #{tpu_custom_call.1} parent=1 // pred_fallthru
      _
    // Predicated region
    $region26: #{tpu_custom_call.1} parent=1 // pred_check
      _
    $region27: #{tpu_custom_call.1} parent=1 // pred_check_branch
      %88 = sbr.rel (0) target = $region29
    $region28: #{tpu_custom_call.1} parent=1 // pred_region
      _
    $region29: #{tpu_custom_call.1} parent=1 // pred_fallthru
      _
    // Predicated region
    $region30: #{tpu_custom_call.1} parent=1 // pred_check
      _
    $region31: #{tpu_custom_call.1} parent=1 // pred_check_branch
      %90 = sbr.rel (0) target = $region33
    $region32: #{tpu_custom_call.1} parent=1 // pred_region
      %92 = vsyncadd [#allocation13], 0
      %s93 = sshll.u32 %s7, 4
      %s94 = int_to_ptr.hbm [resolvable:$true] %s93
      %s95 = sshll.u32 [#allocation12], 4
      %s96 = int_to_ptr.vmem [resolvable:$true] %s95
      %101 = dma.hbm_to_vmem [thread:$0]  %s94, 2048, %s96, [#allocation13], 128, 128, 8
    $region33: #{tpu_custom_call.1} parent=1 // pred_fallthru
      _
    // Predicated region
    $region34: #{tpu_custom_call.1} parent=1 // pred_check
      _
    $region35: #{tpu_custom_call.1} parent=1 // pred_check_branch
      %103 = sbr.rel (0) target = $region37
    $region36: #{tpu_custom_call.1} parent=1 // pred_region
      %105 = vsyncadd [#allocation13], 0
      %s106 = sshll.u32 %s8, 4
      %s107 = int_to_ptr.hbm [resolvable:$true] %s106
      %s108 = sshll.u32 [#allocation14], 4
      %s109 = int_to_ptr.vmem [resolvable:$true] %s108
      %114 = dma.hbm_to_vmem [thread:$0]  %s107, 2048, %s109, [#allocation13], 64, 64, 4
    $region37: #{tpu_custom_call.1} parent=1 // pred_fallthru
      _
    // Predicated region
    $region38: #{tpu_custom_call.1} parent=1 // pred_check
      _
    $region39: #{tpu_custom_call.1} parent=1 // pred_check_branch
      %116 = sbr.rel (0) target = $region41
    $region40: #{tpu_custom_call.1} parent=1 // pred_region
      _
    $region41: #{tpu_custom_call.1} parent=1 // pred_fallthru
      _
    // Predicated region
    $region42: #{tpu_custom_call.1} parent=1 // pred_check
      _
    $region43: #{tpu_custom_call.1} parent=1 // pred_check_branch
      %118 = sbr.rel (0) target = $region45
    $region44: #{tpu_custom_call.1} parent=1 // pred_region
      _
    $region45: #{tpu_custom_call.1} parent=1 // pred_fallthru
      _
    // Predicated region
    $region46: #{tpu_custom_call.1} parent=1 // pred_check
      _
    $region47: #{tpu_custom_call.1} parent=1 // pred_check_branch
      %120 = sbr.rel (0) target = $region49
    $region48: #{tpu_custom_call.1} parent=1 // pred_region
      %122 = vsyncadd [#allocation16], 0
      %s123 = sshll.u32 %s11, 4
      %s124 = int_to_ptr.hbm [resolvable:$true] %s123
      %s125 = sshll.u32 [#allocation15], 4
      %s126 = int_to_ptr.vmem [resolvable:$true] %s125
      %131 = dma.hbm_to_vmem [thread:$0]  %s124, 1024, %s126, [#allocation16], 64, 64, 4
    $region49: #{tpu_custom_call.1} parent=1 // pred_fallthru
      _
    // Predicated region
    $region50: #{tpu_custom_call.1} parent=1 // pred_check
      _
    $region51: #{tpu_custom_call.1} parent=1 // pred_check_branch
      %133 = sbr.rel (0) target = $region53
    $region52: #{tpu_custom_call.1} parent=1 // pred_region
      _
    $region53: #{tpu_custom_call.1} parent=1 // pred_fallthru
      _
    // Predicated region
    $region54: #{tpu_custom_call.1} parent=1 // pred_check
      _
    $region55: #{tpu_custom_call.1} parent=1 // pred_check_branch
      %135 = sbr.rel (0) target = $region57
    $region56: #{tpu_custom_call.1} parent=1 // pred_region
      %137 = dma.done [#allocation4], 512
    $region57: #{tpu_custom_call.1} parent=1 // pred_fallthru
      _
    // Predicated region
    $region58: #{tpu_custom_call.1} parent=1 // pred_check
      _
    $region59: #{tpu_custom_call.1} parent=1 // pred_check_branch
      %139 = sbr.rel (0) target = $region61
    $region60: #{tpu_custom_call.1} parent=1 // pred_region
      %141 = dma.done [#allocation7], 8192
    $region61: #{tpu_custom_call.1} parent=1 // pred_fallthru
      _
    // Predicated region
    $region62: #{tpu_custom_call.1} parent=1 // pred_check
      _
    $region63: #{tpu_custom_call.1} parent=1 // pred_check_branch
      %143 = sbr.rel (0) target = $region65
    $region64: #{tpu_custom_call.1} parent=1 // pred_region
      %145 = dma.done [#allocation7], 128
    $region65: #{tpu_custom_call.1} parent=1 // pred_fallthru
      _
    // Predicated region
    $region66: #{tpu_custom_call.1} parent=1 // pred_check
      _
    $region67: #{tpu_custom_call.1} parent=1 // pred_check_branch
      %147 = sbr.rel (0) target = $region69
    $region68: #{tpu_custom_call.1} parent=1 // pred_region
      %149 = dma.done [#allocation10], 3072
    $region69: #{tpu_custom_call.1} parent=1 // pred_fallthru
      _
    // Predicated region
    $region70: #{tpu_custom_call.1} parent=1 // pred_check
      _
    $region71: #{tpu_custom_call.1} parent=1 // pred_check_branch
      %151 = sbr.rel (0) target = $region73
    $region72: #{tpu_custom_call.1} parent=1 // pred_region
      %153 = dma.done [#allocation10], 1024
    $region73: #{tpu_custom_call.1} parent=1 // pred_fallthru
      _
    // Predicated region
    $region74: #{tpu_custom_call.1} parent=1 // pred_check
      _
    $region75: #{tpu_custom_call.1} parent=1 // pred_check_branch
      %155 = sbr.rel (0) target = $region77
    $region76: #{tpu_custom_call.1} parent=1 // pred_region
      %157 = dma.done [#allocation13], 2048
    $region77: #{tpu_custom_call.1} parent=1 // pred_fallthru
      _
    // Predicated region
    $region78: #{tpu_custom_call.1} parent=1 // pred_check
      _
    $region79: #{tpu_custom_call.1} parent=1 // pred_check_branch
      %159 = sbr.rel (0) target = $region81
    $region80: #{tpu_custom_call.1} parent=1 // pred_region
      %161 = dma.done [#allocation13], 2048
    $region81: #{tpu_custom_call.1} parent=1 // pred_fallthru
      _
    // Predicated region
    $region82: #{tpu_custom_call.1} parent=1 // pred_check
      _
    $region83: #{tpu_custom_call.1} parent=1 // pred_check_branch
      %163 = sbr.rel (0) target = $region85
    $region84: #{tpu_custom_call.1} parent=1 // pred_region
      %165 = dma.done [#allocation16], 1024
    $region85: #{tpu_custom_call.1} parent=1 // pred_fallthru
      _
    %p167 = scmp.eq.s32.totalorder 0, 0
    // Predicated region
    $region86: #{tpu_custom_call.1} parent=1 // pred_check
      %p168 = pneg %p167
    $region87: #{tpu_custom_call.1} parent=1 // pred_check_branch
      %170 = sbr.rel (%p168) target = $region89
    $region88: #{tpu_custom_call.1} parent=1 // pred_region
      %171 = vst [vmem:[#allocation2] sm:$0xff] 0.0
    $region89: #{tpu_custom_call.1} parent=1 // pred_fallthru
      _
    %v172 = vld [vmem:[#allocation2] sm:$0xff]
    %v173 = vld [vmem:[#allocation3] sm:$0xff]
    %v174 = vld [vmem:[#allocation3 + $0x8] sm:$0xff]
    %v175 = vld [vmem:[#allocation3 + $0x10] sm:$0xff]
    %v176 = vld [vmem:[#allocation3 + $0x18] sm:$0xff]
    %v177 = vld [vmem:[#allocation6] sm:$0xf]
    %v178 = vld [vmem:[#allocation6 + $0x4] sm:$0xf]
    %v179 = vld [vmem:[#allocation6 + $0x8] sm:$0xf]
    %v180 = vld [vmem:[#allocation6 + $0xc] sm:$0xf]
    %v181 = vld [vmem:[#allocation6 + $0x10] sm:$0xf]
    %v182 = vld [vmem:[#allocation6 + $0x14] sm:$0xf]
    %v183 = vld [vmem:[#allocation6 + $0x18] sm:$0xf]
    %v184 = vld [vmem:[#allocation6 + $0x1c] sm:$0xf]
    %v185 = vld [vmem:[#allocation6 + $0x20] sm:$0xf]
    %v186 = vld [vmem:[#allocation6 + $0x24] sm:$0xf]
    %v187 = vld [vmem:[#allocation6 + $0x28] sm:$0xf]
    %v188 = vld [vmem:[#allocation6 + $0x2c] sm:$0xf]
    %v189 = vld [vmem:[#allocation6 + $0x30] sm:$0xf]
    %v190 = vld [vmem:[#allocation6 + $0x34] sm:$0xf]
    %v191 = vld [vmem:[#allocation6 + $0x38] sm:$0xf]
    %v192 = vld [vmem:[#allocation6 + $0x3c] sm:$0xf]
    %v193 = vld [vmem:[#allocation6 + $0x40] sm:$0xf]
    %v194 = vld [vmem:[#allocation6 + $0x44] sm:$0xf]
    %v195 = vld [vmem:[#allocation6 + $0x48] sm:$0xf]
    %v196 = vld [vmem:[#allocation6 + $0x4c] sm:$0xf]
    %v197 = vld [vmem:[#allocation6 + $0x50] sm:$0xf]
    %v198 = vld [vmem:[#allocation6 + $0x54] sm:$0xf]
    %v199 = vld [vmem:[#allocation6 + $0x58] sm:$0xf]
    %v200 = vld [vmem:[#allocation6 + $0x5c] sm:$0xf]
    %v201 = vld [vmem:[#allocation6 + $0x60] sm:$0xf]
    %v202 = vld [vmem:[#allocation6 + $0x64] sm:$0xf]
    %v203 = vld [vmem:[#allocation6 + $0x68] sm:$0xf]
    %v204 = vld [vmem:[#allocation6 + $0x6c] sm:$0xf]
    %v205 = vld [vmem:[#allocation6 + $0x70] sm:$0xf]
    %v206 = vld [vmem:[#allocation6 + $0x74] sm:$0xf]
    %v207 = vld [vmem:[#allocation6 + $0x78] sm:$0xf]
    %v208 = vld [vmem:[#allocation6 + $0x7c] sm:$0xf]
    %v209 = vld [vmem:[#allocation6 + $0x80] sm:$0xf]
    %v210 = vld [vmem:[#allocation6 + $0x84] sm:$0xf]
    %v211 = vld [vmem:[#allocation6 + $0x88] sm:$0xf]
    %v212 = vld [vmem:[#allocation6 + $0x8c] sm:$0xf]
    %v213 = vld [vmem:[#allocation6 + $0x90] sm:$0xf]
    %v214 = vld [vmem:[#allocation6 + $0x94] sm:$0xf]
    %v215 = vld [vmem:[#allocation6 + $0x98] sm:$0xf]
    %v216 = vld [vmem:[#allocation6 + $0x9c] sm:$0xf]
    %v217 = vld [vmem:[#allocation6 + $0xa0] sm:$0xf]
    %v218 = vld [vmem:[#allocation6 + $0xa4] sm:$0xf]
    %v219 = vld [vmem:[#allocation6 + $0xa8] sm:$0xf]
    %v220 = vld [vmem:[#allocation6 + $0xac] sm:$0xf]
    %v221 = vld [vmem:[#allocation6 + $0xb0] sm:$0xf]
    %v222 = vld [vmem:[#allocation6 + $0xb4] sm:$0xf]
    %v223 = vld [vmem:[#allocation6 + $0xb8] sm:$0xf]
    %v224 = vld [vmem:[#allocation6 + $0xbc] sm:$0xf]
    %v225 = vld [vmem:[#allocation6 + $0xc0] sm:$0xf]
    %v226 = vld [vmem:[#allocation6 + $0xc4] sm:$0xf]
    %v227 = vld [vmem:[#allocation6 + $0xc8] sm:$0xf]
    %v228 = vld [vmem:[#allocation6 + $0xcc] sm:$0xf]
    %v229 = vld [vmem:[#allocation6 + $0xd0] sm:$0xf]
    %v230 = vld [vmem:[#allocation6 + $0xd4] sm:$0xf]
    %v231 = vld [vmem:[#allocation6 + $0xd8] sm:$0xf]
    %v232 = vld [vmem:[#allocation6 + $0xdc] sm:$0xf]
    %v233 = vld [vmem:[#allocation6 + $0xe0] sm:$0xf]
    %v234 = vld [vmem:[#allocation6 + $0xe4] sm:$0xf]
    %v235 = vld [vmem:[#allocation6 + $0xe8] sm:$0xf]
    %v236 = vld [vmem:[#allocation6 + $0xec] sm:$0xf]
    %v237 = vld [vmem:[#allocation6 + $0xf0] sm:$0xf]
    %v238 = vld [vmem:[#allocation6 + $0xf4] sm:$0xf]
    %v239 = vld [vmem:[#allocation6 + $0xf8] sm:$0xf]
    %v240 = vld [vmem:[#allocation6 + $0xfc] sm:$0xf]
    %v241 = vld [vmem:[#allocation6 + $0x100] sm:$0xf]
    %v242 = vld [vmem:[#allocation6 + $0x104] sm:$0xf]
    %v243 = vld [vmem:[#allocation6 + $0x108] sm:$0xf]
    %v244 = vld [vmem:[#allocation6 + $0x10c] sm:$0xf]
    %v245 = vld [vmem:[#allocation6 + $0x110] sm:$0xf]
    %v246 = vld [vmem:[#allocation6 + $0x114] sm:$0xf]
    %v247 = vld [vmem:[#allocation6 + $0x118] sm:$0xf]
    %v248 = vld [vmem:[#allocation6 + $0x11c] sm:$0xf]
    %v249 = vld [vmem:[#allocation6 + $0x120] sm:$0xf]
    %v250 = vld [vmem:[#allocation6 + $0x124] sm:$0xf]
    %v251 = vld [vmem:[#allocation6 + $0x128] sm:$0xf]
    %v252 = vld [vmem:[#allocation6 + $0x12c] sm:$0xf]
    %v253 = vld [vmem:[#allocation6 + $0x130] sm:$0xf]
    %v254 = vld [vmem:[#allocation6 + $0x134] sm:$0xf]
    %v255 = vld [vmem:[#allocation6 + $0x138] sm:$0xf]
    %v256 = vld [vmem:[#allocation6 + $0x13c] sm:$0xf]
    %v257 = vld [vmem:[#allocation6 + $0x140] sm:$0xf]
    %v258 = vld [vmem:[#allocation6 + $0x144] sm:$0xf]
    %v259 = vld [vmem:[#allocation6 + $0x148] sm:$0xf]
    %v260 = vld [vmem:[#allocation6 + $0x14c] sm:$0xf]
    %v261 = vld [vmem:[#allocation6 + $0x150] sm:$0xf]
    %v262 = vld [vmem:[#allocation6 + $0x154] sm:$0xf]
    %v263 = vld [vmem:[#allocation6 + $0x158] sm:$0xf]
    %v264 = vld [vmem:[#allocation6 + $0x15c] sm:$0xf]
    %v265 = vld [vmem:[#allocation6 + $0x160] sm:$0xf]
    %v266 = vld [vmem:[#allocation6 + $0x164] sm:$0xf]
    %v267 = vld [vmem:[#allocation6 + $0x168] sm:$0xf]
    %v268 = vld [vmem:[#allocation6 + $0x16c] sm:$0xf]
    %v269 = vld [vmem:[#allocation6 + $0x170] sm:$0xf]
    %v270 = vld [vmem:[#allocation6 + $0x174] sm:$0xf]
    %v271 = vld [vmem:[#allocation6 + $0x178] sm:$0xf]
    %v272 = vld [vmem:[#allocation6 + $0x17c] sm:$0xf]
    %v273 = vld [vmem:[#allocation6 + $0x180] sm:$0xf]
    %v274 = vld [vmem:[#allocation6 + $0x184] sm:$0xf]
    %v275 = vld [vmem:[#allocation6 + $0x188] sm:$0xf]
    %v276 = vld [vmem:[#allocation6 + $0x18c] sm:$0xf]
    %v277 = vld [vmem:[#allocation6 + $0x190] sm:$0xf]
    %v278 = vld [vmem:[#allocation6 + $0x194] sm:$0xf]
    %v279 = vld [vmem:[#allocation6 + $0x198] sm:$0xf]
    %v280 = vld [vmem:[#allocation6 + $0x19c] sm:$0xf]
    %v281 = vld [vmem:[#allocation6 + $0x1a0] sm:$0xf]
    %v282 = vld [vmem:[#allocation6 + $0x1a4] sm:$0xf]
    %v283 = vld [vmem:[#allocation6 + $0x1a8] sm:$0xf]
    %v284 = vld [vmem:[#allocation6 + $0x1ac] sm:$0xf]
    %v285 = vld [vmem:[#allocation6 + $0x1b0] sm:$0xf]
    %v286 = vld [vmem:[#allocation6 + $0x1b4] sm:$0xf]
    %v287 = vld [vmem:[#allocation6 + $0x1b8] sm:$0xf]
    %v288 = vld [vmem:[#allocation6 + $0x1bc] sm:$0xf]
    %v289 = vld [vmem:[#allocation6 + $0x1c0] sm:$0xf]
    %v290 = vld [vmem:[#allocation6 + $0x1c4] sm:$0xf]
    %v291 = vld [vmem:[#allocation6 + $0x1c8] sm:$0xf]
    %v292 = vld [vmem:[#allocation6 + $0x1cc] sm:$0xf]
    %v293 = vld [vmem:[#allocation6 + $0x1d0] sm:$0xf]
    %v294 = vld [vmem:[#allocation6 + $0x1d4] sm:$0xf]
    %v295 = vld [vmem:[#allocation6 + $0x1d8] sm:$0xf]
    %v296 = vld [vmem:[#allocation6 + $0x1dc] sm:$0xf]
    %v297 = vld [vmem:[#allocation6 + $0x1e0] sm:$0xf]
    %v298 = vld [vmem:[#allocation6 + $0x1e4] sm:$0xf]
    %v299 = vld [vmem:[#allocation6 + $0x1e8] sm:$0xf]
    %v300 = vld [vmem:[#allocation6 + $0x1ec] sm:$0xf]
    %v301 = vld [vmem:[#allocation6 + $0x1f0] sm:$0xf]
    %v302 = vld [vmem:[#allocation6 + $0x1f4] sm:$0xf]
    %v303 = vld [vmem:[#allocation6 + $0x1f8] sm:$0xf]
    %v304 = vld [vmem:[#allocation6 + $0x1fc] sm:$0xf]
    %v309 = vunpack.c.l.b16 %v173
    %v310 = vunpack.c.h.b16 %v173
    %v311 = vunpack.c.l.b16 %v174
    %v312 = vunpack.c.h.b16 %v174
    %v313 = vunpack.c.l.b16 %v175
    %v314 = vunpack.c.h.b16 %v175
    %v315 = vunpack.c.l.b16 %v176
    %v316 = vunpack.c.h.b16 %v176
    %v317 = vpack.c.b16 %v309, %v309
    %v318 = vpack.c.b16 %v310, %v310
    %v319 = vpack.c.b16 %v311, %v311
    %v320 = vpack.c.b16 %v312, %v312
    %v321 = vpack.c.b16 %v313, %v313
    %v322 = vpack.c.b16 %v314, %v314
    %v323 = vpack.c.b16 %v315, %v315
    %v324 = vpack.c.b16 %v316, %v316
    %v461 = vunpack.c.l.b16 %v177
    %v462 = vunpack.c.l.b16 %v178
    %v463 = vunpack.c.l.b16 %v179
    %v464 = vunpack.c.l.b16 %v180
    %v465 = vunpack.c.l.b16 %v181
    %v466 = vunpack.c.l.b16 %v182
    %v467 = vunpack.c.l.b16 %v183
    %v468 = vunpack.c.l.b16 %v184
    %v469 = vunpack.c.l.b16 %v185
    %v470 = vunpack.c.l.b16 %v186
    %v471 = vunpack.c.l.b16 %v187
    %v472 = vunpack.c.l.b16 %v188
    %v473 = vunpack.c.l.b16 %v189
    %v474 = vunpack.c.l.b16 %v190
    %v475 = vunpack.c.l.b16 %v191
    %v476 = vunpack.c.l.b16 %v192
    %v477 = vunpack.c.l.b16 %v193
    %v478 = vunpack.c.l.b16 %v194
    %v479 = vunpack.c.l.b16 %v195
    %v480 = vunpack.c.l.b16 %v196
    %v481 = vunpack.c.l.b16 %v197
    %v482 = vunpack.c.l.b16 %v198
    %v483 = vunpack.c.l.b16 %v199
    %v484 = vunpack.c.l.b16 %v200
    %v485 = vunpack.c.l.b16 %v201
    %v486 = vunpack.c.l.b16 %v202
    %v487 = vunpack.c.l.b16 %v203
    %v488 = vunpack.c.l.b16 %v204
    %v489 = vunpack.c.l.b16 %v205
    %v490 = vunpack.c.l.b16 %v206
    %v491 = vunpack.c.l.b16 %v207
    %v492 = vunpack.c.l.b16 %v208
    %v493 = vunpack.c.l.b16 %v209
    %v494 = vunpack.c.l.b16 %v210
    %v495 = vunpack.c.l.b16 %v211
    %v496 = vunpack.c.l.b16 %v212
    %v497 = vunpack.c.l.b16 %v213
    %v498 = vunpack.c.l.b16 %v214
    %v499 = vunpack.c.l.b16 %v215
    %v500 = vunpack.c.l.b16 %v216
    %v501 = vunpack.c.l.b16 %v217
    %v502 = vunpack.c.l.b16 %v218
    %v503 = vunpack.c.l.b16 %v219
    %v504 = vunpack.c.l.b16 %v220
    %v505 = vunpack.c.l.b16 %v221
    %v506 = vunpack.c.l.b16 %v222
    %v507 = vunpack.c.l.b16 %v223
    %v508 = vunpack.c.l.b16 %v224
    %v509 = vunpack.c.l.b16 %v225
    %v510 = vunpack.c.l.b16 %v226
    %v511 = vunpack.c.l.b16 %v227
    %v512 = vunpack.c.l.b16 %v228
    %v513 = vunpack.c.l.b16 %v229
    %v514 = vunpack.c.l.b16 %v230
    %v515 = vunpack.c.l.b16 %v231
    %v516 = vunpack.c.l.b16 %v232
    %v517 = vunpack.c.l.b16 %v233
    %v518 = vunpack.c.l.b16 %v234
    %v519 = vunpack.c.l.b16 %v235
    %v520 = vunpack.c.l.b16 %v236
    %v521 = vunpack.c.l.b16 %v237
    %v522 = vunpack.c.l.b16 %v238
    %v523 = vunpack.c.l.b16 %v239
    %v524 = vunpack.c.l.b16 %v240
    %v525 = vunpack.c.l.b16 %v241
    %v526 = vunpack.c.l.b16 %v242
    %v527 = vunpack.c.l.b16 %v243
    %v528 = vunpack.c.l.b16 %v244
    %v529 = vunpack.c.l.b16 %v245
    %v530 = vunpack.c.l.b16 %v246
    %v531 = vunpack.c.l.b16 %v247
    %v532 = vunpack.c.l.b16 %v248
    %v533 = vunpack.c.l.b16 %v249
    %v534 = vunpack.c.l.b16 %v250
    %v535 = vunpack.c.l.b16 %v251
    %v536 = vunpack.c.l.b16 %v252
    %v537 = vunpack.c.l.b16 %v253
    %v538 = vunpack.c.l.b16 %v254
    %v539 = vunpack.c.l.b16 %v255
    %v540 = vunpack.c.l.b16 %v256
    %v541 = vunpack.c.l.b16 %v257
    %v542 = vunpack.c.l.b16 %v258
    %v543 = vunpack.c.l.b16 %v259
    %v544 = vunpack.c.l.b16 %v260
    %v545 = vunpack.c.l.b16 %v261
    %v546 = vunpack.c.l.b16 %v262
    %v547 = vunpack.c.l.b16 %v263
    %v548 = vunpack.c.l.b16 %v264
    %v549 = vunpack.c.l.b16 %v265
    %v550 = vunpack.c.l.b16 %v266
    %v551 = vunpack.c.l.b16 %v267
    %v552 = vunpack.c.l.b16 %v268
    %v553 = vunpack.c.l.b16 %v269
    %v554 = vunpack.c.l.b16 %v270
    %v555 = vunpack.c.l.b16 %v271
    %v556 = vunpack.c.l.b16 %v272
    %v557 = vunpack.c.l.b16 %v273
    %v558 = vunpack.c.l.b16 %v274
    %v559 = vunpack.c.l.b16 %v275
    %v560 = vunpack.c.l.b16 %v276
    %v561 = vunpack.c.l.b16 %v277
    %v562 = vunpack.c.l.b16 %v278
    %v563 = vunpack.c.l.b16 %v279
    %v564 = vunpack.c.l.b16 %v280
    %v565 = vunpack.c.l.b16 %v281
    %v566 = vunpack.c.l.b16 %v282
    %v567 = vunpack.c.l.b16 %v283
    %v568 = vunpack.c.l.b16 %v284
    %v569 = vunpack.c.l.b16 %v285
    %v570 = vunpack.c.l.b16 %v286
    %v571 = vunpack.c.l.b16 %v287
    %v572 = vunpack.c.l.b16 %v288
    %v573 = vunpack.c.l.b16 %v289
    %v574 = vunpack.c.l.b16 %v290
    %v575 = vunpack.c.l.b16 %v291
    %v576 = vunpack.c.l.b16 %v292
    %v577 = vunpack.c.l.b16 %v293
    %v578 = vunpack.c.l.b16 %v294
    %v579 = vunpack.c.l.b16 %v295
    %v580 = vunpack.c.l.b16 %v296
    %v581 = vunpack.c.l.b16 %v297
    %v582 = vunpack.c.l.b16 %v298
    %v583 = vunpack.c.l.b16 %v299
    %v584 = vunpack.c.l.b16 %v300
    %v585 = vunpack.c.l.b16 %v301
    %v586 = vunpack.c.l.b16 %v302
    %v587 = vunpack.c.l.b16 %v303
    %v588 = vunpack.c.l.b16 %v304
    %v589 = vpack.c.b16 %v462, %v461
    %v590 = vpack.c.b16 %v464, %v463
    %v591 = vpack.c.b16 %v466, %v465
    %v592 = vpack.c.b16 %v468, %v467
    %v593 = vpack.c.b16 %v470, %v469
    %v594 = vpack.c.b16 %v472, %v471
    %v595 = vpack.c.b16 %v474, %v473
    %v596 = vpack.c.b16 %v476, %v475
    %v597 = vpack.c.b16 %v478, %v477
    %v598 = vpack.c.b16 %v480, %v479
    %v599 = vpack.c.b16 %v482, %v481
    %v600 = vpack.c.b16 %v484, %v483
    %v601 = vpack.c.b16 %v486, %v485
    %v602 = vpack.c.b16 %v488, %v487
    %v603 = vpack.c.b16 %v490, %v489
    %v604 = vpack.c.b16 %v492, %v491
    %v605 = vpack.c.b16 %v494, %v493
    %v606 = vpack.c.b16 %v496, %v495
    %v607 = vpack.c.b16 %v498, %v497
    %v608 = vpack.c.b16 %v500, %v499
    %v609 = vpack.c.b16 %v502, %v501
    %v610 = vpack.c.b16 %v504, %v503
    %v611 = vpack.c.b16 %v506, %v505
    %v612 = vpack.c.b16 %v508, %v507
    %v613 = vpack.c.b16 %v510, %v509
    %v614 = vpack.c.b16 %v512, %v511
    %v615 = vpack.c.b16 %v514, %v513
    %v616 = vpack.c.b16 %v516, %v515
    %v617 = vpack.c.b16 %v518, %v517
    %v618 = vpack.c.b16 %v520, %v519
    %v619 = vpack.c.b16 %v522, %v521
    %v620 = vpack.c.b16 %v524, %v523
    %v621 = vpack.c.b16 %v526, %v525
    %v622 = vpack.c.b16 %v528, %v527
    %v623 = vpack.c.b16 %v530, %v529
    %v624 = vpack.c.b16 %v532, %v531
    %v625 = vpack.c.b16 %v534, %v533
    %v626 = vpack.c.b16 %v536, %v535
    %v627 = vpack.c.b16 %v538, %v537
    %v628 = vpack.c.b16 %v540, %v539
    %v629 = vpack.c.b16 %v542, %v541
    %v630 = vpack.c.b16 %v544, %v543
    %v631 = vpack.c.b16 %v546, %v545
    %v632 = vpack.c.b16 %v548, %v547
    %v633 = vpack.c.b16 %v550, %v549
    %v634 = vpack.c.b16 %v552, %v551
    %v635 = vpack.c.b16 %v554, %v553
    %v636 = vpack.c.b16 %v556, %v555
    %v637 = vpack.c.b16 %v558, %v557
    %v638 = vpack.c.b16 %v560, %v559
    %v639 = vpack.c.b16 %v562, %v561
    %v640 = vpack.c.b16 %v564, %v563
    %v641 = vpack.c.b16 %v566, %v565
    %v642 = vpack.c.b16 %v568, %v567
    %v643 = vpack.c.b16 %v570, %v569
    %v644 = vpack.c.b16 %v572, %v571
    %v645 = vpack.c.b16 %v574, %v573
    %v646 = vpack.c.b16 %v576, %v575
    %v647 = vpack.c.b16 %v578, %v577
    %v648 = vpack.c.b16 %v580, %v579
    %v649 = vpack.c.b16 %v582, %v581
    %v650 = vpack.c.b16 %v584, %v583
    %v651 = vpack.c.b16 %v586, %v585
    %v652 = vpack.c.b16 %v588, %v587
    %717 = vmatpush.bf16.msra.mxu0 %v596
    %718 = vmatpush.bf16.msra.mxu0 %v595
    %719 = vmatpush.bf16.msra.mxu0 %v594
    %720 = vmatpush.bf16.msra.mxu0 %v593
    %721 = vmatpush.bf16.msra.mxu0 %v592
    %722 = vmatpush.bf16.msra.mxu0 %v591
    %723 = vmatpush.bf16.msra.mxu0 %v590
    %724 = vmatpush.bf16.msra.mxu0 %v589
    %725 = vmatmul.bf16.gmra.mxu0 %v317
    %v726 = vpop.f32.mrf.mxu0
    %v727 = vadd.f32 0.0, %v726
    %v728 = vpop.f32.mrf.mxu0
    %729 = vdwg.mxu0
    %730 = vmatpush.bf16.msra.mxu0 %v604
    %731 = vmatpush.bf16.msra.mxu0 %v603
    %732 = vmatpush.bf16.msra.mxu0 %v602
    %733 = vmatpush.bf16.msra.mxu0 %v601
    %734 = vmatpush.bf16.msra.mxu0 %v600
    %735 = vmatpush.bf16.msra.mxu0 %v599
    %736 = vmatpush.bf16.msra.mxu0 %v598
    %737 = vmatpush.bf16.msra.mxu0 %v597
    %738 = vmatmul.bf16.gmra.mxu0 %v318
    %v739 = vpop.f32.mrf.mxu0
    %v740 = vadd.f32 %v727, %v739
    %v741 = vpop.f32.mrf.mxu0
    %742 = vdwg.mxu0
    %743 = vmatpush.bf16.msra.mxu0 %v612
    %744 = vmatpush.bf16.msra.mxu0 %v611
    %745 = vmatpush.bf16.msra.mxu0 %v610
    %746 = vmatpush.bf16.msra.mxu0 %v609
    %747 = vmatpush.bf16.msra.mxu0 %v608
    %748 = vmatpush.bf16.msra.mxu0 %v607
    %749 = vmatpush.bf16.msra.mxu0 %v606
    %750 = vmatpush.bf16.msra.mxu0 %v605
    %751 = vmatmul.bf16.gmra.mxu0 %v319
    %v752 = vpop.f32.mrf.mxu0
    %v753 = vadd.f32 %v740, %v752
    %v754 = vpop.f32.mrf.mxu0
    %755 = vdwg.mxu0
    %756 = vmatpush.bf16.msra.mxu0 %v620
    %757 = vmatpush.bf16.msra.mxu0 %v619
    %758 = vmatpush.bf16.msra.mxu0 %v618
    %759 = vmatpush.bf16.msra.mxu0 %v617
    %760 = vmatpush.bf16.msra.mxu0 %v616
    %761 = vmatpush.bf16.msra.mxu0 %v615
    %762 = vmatpush.bf16.msra.mxu0 %v614
    %763 = vmatpush.bf16.msra.mxu0 %v613
    %764 = vmatmul.bf16.gmra.mxu0 %v320
    %v765 = vpop.f32.mrf.mxu0
    %v766 = vadd.f32 %v753, %v765
    %v767 = vpop.f32.mrf.mxu0
    %768 = vdwg.mxu0
    %769 = vmatpush.bf16.msra.mxu0 %v628
    %770 = vmatpush.bf16.msra.mxu0 %v627
    %771 = vmatpush.bf16.msra.mxu0 %v626
    %772 = vmatpush.bf16.msra.mxu0 %v625
    %773 = vmatpush.bf16.msra.mxu0 %v624
    %774 = vmatpush.bf16.msra.mxu0 %v623
    %775 = vmatpush.bf16.msra.mxu0 %v622
    %776 = vmatpush.bf16.msra.mxu0 %v621
    %777 = vmatmul.bf16.gmra.mxu0 %v321
    %v778 = vpop.f32.mrf.mxu0
    %v779 = vadd.f32 %v766, %v778
    %v780 = vpop.f32.mrf.mxu0
    %781 = vdwg.mxu0
    %782 = vmatpush.bf16.msra.mxu0 %v636
    %783 = vmatpush.bf16.msra.mxu0 %v635
    %784 = vmatpush.bf16.msra.mxu0 %v634
    %785 = vmatpush.bf16.msra.mxu0 %v633
    %786 = vmatpush.bf16.msra.mxu0 %v632
    %787 = vmatpush.bf16.msra.mxu0 %v631
    %788 = vmatpush.bf16.msra.mxu0 %v630
    %789 = vmatpush.bf16.msra.mxu0 %v629
    %790 = vmatmul.bf16.gmra.mxu0 %v322
    %v791 = vpop.f32.mrf.mxu0
    %v792 = vadd.f32 %v779, %v791
    %v793 = vpop.f32.mrf.mxu0
    %794 = vdwg.mxu0
    %795 = vmatpush.bf16.msra.mxu0 %v644
    %796 = vmatpush.bf16.msra.mxu0 %v643
    %797 = vmatpush.bf16.msra.mxu0 %v642
    %798 = vmatpush.bf16.msra.mxu0 %v641
    %799 = vmatpush.bf16.msra.mxu0 %v640
    %800 = vmatpush.bf16.msra.mxu0 %v639
    %801 = vmatpush.bf16.msra.mxu0 %v638
    %802 = vmatpush.bf16.msra.mxu0 %v637
    %803 = vmatmul.bf16.gmra.mxu0 %v323
    %v804 = vpop.f32.mrf.mxu0
    %v805 = vadd.f32 %v792, %v804
    %v806 = vpop.f32.mrf.mxu0
    %807 = vdwg.mxu0
    %808 = vmatpush.bf16.msra.mxu0 %v652
    %809 = vmatpush.bf16.msra.mxu0 %v651
    %810 = vmatpush.bf16.msra.mxu0 %v650
    %811 = vmatpush.bf16.msra.mxu0 %v649
    %812 = vmatpush.bf16.msra.mxu0 %v648
    %813 = vmatpush.bf16.msra.mxu0 %v647
    %814 = vmatpush.bf16.msra.mxu0 %v646
    %815 = vmatpush.bf16.msra.mxu0 %v645
    %816 = vmatmul.bf16.gmra.mxu0 %v324
    %v817 = vpop.f32.mrf.mxu0
    %v818 = vadd.f32 %v805, %v817
    %v819 = vpop.f32.mrf.mxu0
    %820 = vdwg.mxu0
    %v821 = vadd.f32 %v172, %v818
    %822 = vst [vmem:[#allocation2] sm:$0xff] %v821
    // Predicated region
    $region90: #{tpu_custom_call.1} parent=1 // pred_check
      %p823 = pneg %p167
    $region91: #{tpu_custom_call.1} parent=1 // pred_check_branch
      %825 = sbr.rel (%p823) target = $region93
    $region92: #{tpu_custom_call.1} parent=1 // pred_region
      %v826 = vld [vmem:[#allocation2] sm:$0xff]
      %v827 = vld [vmem:[#allocation8] sm:$0xff]
      %v828 = vadd.f32 %v826, %v827
      %v829 = vld [vmem:[%s5] sm:$0x1]
      %v830 = vld [vmem:[%s6] sm:$0x1]
      %831 = vadd.xlane.f32.xlu0 %v828
      %v832 = vpop.xlane.xlu0 %831
      %v833 = vrcp.pop 128.0
      %v834 = vmul.f32 128.0, %v833
      %v835 = vsub.f32 1.0, %v834
      %v836 = vmul.f32 %v833, %v835
      %v837 = vadd.f32 %v833, %v836
      %vm838 = vweird.f32 %v833
      %v839 = vsel %vm838, %v833, %v837
      %v840 = vmul.f32 %v832, %v839
      %v841 = vmul.f32 %v828, %v828
      %842 = vadd.xlane.f32.xlu0 %v841
      %v843 = vpop.xlane.xlu0 %842
      %v844 = vmul.f32 %v843, %v839
      %v845 = vmul.f32 %v840, %v840
      %v846 = vsub.f32 %v844, %v845
      %v847 = vmax.f32 %v846, 0.0
      %v848 = vsub.f32 %v828, %v840
      %v849 = vadd.f32 %v847, 1e-05
      %v850 = vrsqrt.pop %v849
      %v851 = vmul.f32 %v850, %v849
      %v852 = vmul.f32 %v851, %v850
      %v853 = vmul.f32 0.5, %v852
      %v854 = vsub.f32 1.5, %v853
      %v855 = vmul.f32 %v850, %v854
      %vm856 = vweird.f32 %v849
      %vm857 = vweird.f32 %v850
      %vm858 = vmor %vm856, %vm857
      %v859 = vsel %vm858, %v850, %v855
      %v860 = vmul.f32 %v848, %v859
      %v862 = vperm.slane %v829, 0
      %v864 = vmul.f32 %v860, %v862
      %v866 = vperm.slane %v830, 0
      %v868 = vadd.f32 %v864, %v866
      %v869 = vpack.c.bf16 %v868, %v868
      %v870 = vld [vmem:[#allocation9] sm:$0xff]
      %v871 = vld [vmem:[#allocation9 + $0x8] sm:$0xf]
      %v872 = vld [vmem:[#allocation9 + $0xc] sm:$0xff]
      %v873 = vld [vmem:[#allocation9 + $0x14] sm:$0xf]
      %v874 = vld [vmem:[#allocation9 + $0x18] sm:$0xff]
      %v875 = vld [vmem:[#allocation9 + $0x20] sm:$0xf]
      %v876 = vld [vmem:[#allocation9 + $0x24] sm:$0xff]
      %v877 = vld [vmem:[#allocation9 + $0x2c] sm:$0xf]
      %v878 = vld [vmem:[#allocation9 + $0x30] sm:$0xff]
      %v879 = vld [vmem:[#allocation9 + $0x38] sm:$0xf]
      %v880 = vld [vmem:[#allocation9 + $0x3c] sm:$0xff]
      %v881 = vld [vmem:[#allocation9 + $0x44] sm:$0xf]
      %v882 = vld [vmem:[#allocation9 + $0x48] sm:$0xff]
      %v883 = vld [vmem:[#allocation9 + $0x50] sm:$0xf]
      %v884 = vld [vmem:[#allocation9 + $0x54] sm:$0xff]
      %v885 = vld [vmem:[#allocation9 + $0x5c] sm:$0xf]
      %v886 = vld [vmem:[#allocation9 + $0x60] sm:$0xff]
      %v887 = vld [vmem:[#allocation9 + $0x68] sm:$0xf]
      %v888 = vld [vmem:[#allocation9 + $0x6c] sm:$0xff]
      %v889 = vld [vmem:[#allocation9 + $0x74] sm:$0xf]
      %v890 = vld [vmem:[#allocation9 + $0x78] sm:$0xff]
      %v891 = vld [vmem:[#allocation9 + $0x80] sm:$0xf]
      %v892 = vld [vmem:[#allocation9 + $0x84] sm:$0xff]
      %v893 = vld [vmem:[#allocation9 + $0x8c] sm:$0xf]
      %v894 = vld [vmem:[#allocation9 + $0x90] sm:$0xff]
      %v895 = vld [vmem:[#allocation9 + $0x98] sm:$0xf]
      %v896 = vld [vmem:[#allocation9 + $0x9c] sm:$0xff]
      %v897 = vld [vmem:[#allocation9 + $0xa4] sm:$0xf]
      %v898 = vld [vmem:[#allocation9 + $0xa8] sm:$0xff]
      %v899 = vld [vmem:[#allocation9 + $0xb0] sm:$0xf]
      %v900 = vld [vmem:[#allocation9 + $0xb4] sm:$0xff]
      %v901 = vld [vmem:[#allocation9 + $0xbc] sm:$0xf]
      %v934 = vunpack.c.l.b16 %v870
      %v935 = vunpack.c.h.b16 %v870
      %v936 = vunpack.c.l.b16 %v871
      %v937 = vunpack.c.l.b16 %v872
      %v938 = vunpack.c.h.b16 %v872
      %v939 = vunpack.c.l.b16 %v873
      %v940 = vunpack.c.l.b16 %v874
      %v941 = vunpack.c.h.b16 %v874
      %v942 = vunpack.c.l.b16 %v875
      %v943 = vunpack.c.l.b16 %v876
      %v944 = vunpack.c.h.b16 %v876
      %v945 = vunpack.c.l.b16 %v877
      %v946 = vunpack.c.l.b16 %v878
      %v947 = vunpack.c.h.b16 %v878
      %v948 = vunpack.c.l.b16 %v879
      %v949 = vunpack.c.l.b16 %v880
      %v950 = vunpack.c.h.b16 %v880
      %v951 = vunpack.c.l.b16 %v881
      %v952 = vunpack.c.l.b16 %v882
      %v953 = vunpack.c.h.b16 %v882
      %v954 = vunpack.c.l.b16 %v883
      %v955 = vunpack.c.l.b16 %v884
      %v956 = vunpack.c.h.b16 %v884
      %v957 = vunpack.c.l.b16 %v885
      %v958 = vunpack.c.l.b16 %v886
      %v959 = vunpack.c.h.b16 %v886
      %v960 = vunpack.c.l.b16 %v887
      %v961 = vunpack.c.l.b16 %v888
      %v962 = vunpack.c.h.b16 %v888
      %v963 = vunpack.c.l.b16 %v889
      %v964 = vunpack.c.l.b16 %v890
      %v965 = vunpack.c.h.b16 %v890
      %v966 = vunpack.c.l.b16 %v891
      %v967 = vunpack.c.l.b16 %v892
      %v968 = vunpack.c.h.b16 %v892
      %v969 = vunpack.c.l.b16 %v893
      %v970 = vunpack.c.l.b16 %v894
      %v971 = vunpack.c.h.b16 %v894
      %v972 = vunpack.c.l.b16 %v895
      %v973 = vunpack.c.l.b16 %v896
      %v974 = vunpack.c.h.b16 %v896
      %v975 = vunpack.c.l.b16 %v897
      %v976 = vunpack.c.l.b16 %v898
      %v977 = vunpack.c.h.b16 %v898
      %v978 = vunpack.c.l.b16 %v899
      %v979 = vunpack.c.l.b16 %v900
      %v980 = vunpack.c.h.b16 %v900
      %v981 = vunpack.c.l.b16 %v901
      %v982 = vpack.c.b16 %v937, %v934
      %v983 = vpack.c.b16 %v938, %v935
      %v984 = vpack.c.b16 %v939, %v936
      %v985 = vpack.c.b16 %v943, %v940
      %v986 = vpack.c.b16 %v944, %v941
      %v987 = vpack.c.b16 %v945, %v942
      %v988 = vpack.c.b16 %v949, %v946
      %v989 = vpack.c.b16 %v950, %v947
      %v990 = vpack.c.b16 %v951, %v948
      %v991 = vpack.c.b16 %v955, %v952
      %v992 = vpack.c.b16 %v956, %v953
      %v993 = vpack.c.b16 %v957, %v954
      %v994 = vpack.c.b16 %v961, %v958
      %v995 = vpack.c.b16 %v962, %v959
      %v996 = vpack.c.b16 %v963, %v960
      %v997 = vpack.c.b16 %v967, %v964
      %v998 = vpack.c.b16 %v968, %v965
      %v999 = vpack.c.b16 %v969, %v966
      %v1000 = vpack.c.b16 %v973, %v970
      %v1001 = vpack.c.b16 %v974, %v971
      %v1002 = vpack.c.b16 %v975, %v972
      %v1003 = vpack.c.b16 %v979, %v976
      %v1004 = vpack.c.b16 %v980, %v977
      %v1005 = vpack.c.b16 %v981, %v978
      %1030 = vmatpush.bf16.msra.mxu0 %v1003
      %1031 = vmatpush.bf16.msra.mxu0 %v1000
      %1032 = vmatpush.bf16.msra.mxu0 %v997
      %1033 = vmatpush.bf16.msra.mxu0 %v994
      %1034 = vmatpush.bf16.msra.mxu0 %v991
      %1035 = vmatpush.bf16.msra.mxu0 %v988
      %1036 = vmatpush.bf16.msra.mxu0 %v985
      %1037 = vmatpush.bf16.msra.mxu0 %v982
      %1038 = vmatmul.bf16.gmra.mxu0 %v869
      %v1039 = vpop.f32.mrf.mxu0
      %v1040 = vadd.f32 0.0, %v1039
      %v1041 = vpop.f32.mrf.mxu0
      %1042 = vdwg.mxu0
      %1043 = vmatpush.bf16.msra.mxu0 %v1004
      %1044 = vmatpush.bf16.msra.mxu0 %v1001
      %1045 = vmatpush.bf16.msra.mxu0 %v998
      %1046 = vmatpush.bf16.msra.mxu0 %v995
      %1047 = vmatpush.bf16.msra.mxu0 %v992
      %1048 = vmatpush.bf16.msra.mxu0 %v989
      %1049 = vmatpush.bf16.msra.mxu0 %v986
      %1050 = vmatpush.bf16.msra.mxu0 %v983
      %1051 = vmatmul.bf16.gmra.mxu0 %v869
      %v1052 = vpop.f32.mrf.mxu0
      %v1053 = vadd.f32 0.0, %v1052
      %v1054 = vpop.f32.mrf.mxu0
      %1055 = vdwg.mxu0
      %1056 = vmatpush.bf16.msra.mxu0 %v1005
      %1057 = vmatpush.bf16.msra.mxu0 %v1002
      %1058 = vmatpush.bf16.msra.mxu0 %v999
      %1059 = vmatpush.bf16.msra.mxu0 %v996
      %1060 = vmatpush.bf16.msra.mxu0 %v993
      %1061 = vmatpush.bf16.msra.mxu0 %v990
      %1062 = vmatpush.bf16.msra.mxu0 %v987
      %1063 = vmatpush.bf16.msra.mxu0 %v984
      %1064 = vmatmul.bf16.gmra.mxu0 %v869
      %v1065 = vpop.f32.mrf.mxu0
      %v1066 = vadd.f32 0.0, %v1065
      %v1067 = vpop.f32.mrf.mxu0
      %1068 = vdwg.mxu0
      %v1069 = vmul.f32 %v1040, 0.088388346
      %v1070 = vpack.c.bf16 %v1069, %v1069
      %v1071 = vpack.c.bf16 %v1053, %v1053
      %v1072 = vpack.c.bf16 %v1066, %v1066
      %1073 = vmatpush.bf16.xpose.msra.mxu0 0
      %1074 = vmatpush.bf16.xpose.msra.mxu0 0
      %1075 = vmatpush.bf16.xpose.msra.mxu0 0
      %1076 = vmatpush.bf16.xpose.msra.mxu0 0
      %1077 = vmatpush.bf16.xpose.msra.mxu0 0
      %1078 = vmatpush.bf16.xpose.msra.mxu0 0
      %1079 = vmatpush.bf16.xpose.msra.mxu0 0
      %1080 = vmatpush.bf16.xpose.msra.mxu0 %v1071
      %1081 = vmatmul.bf16.gmra.mxu0 %v1070
      %v1082 = vpop.f32.mrf.mxu0
      %v1083 = vadd.f32 0.0, %v1082
      %v1084 = vpop.f32.mrf.mxu0
      %1085 = vdwg.mxu0
      %v1086 = vlaneseq
      %v1087 = vshrl.u32 %v1086, 7
      %v1088 = vlaneseq
      %v1089 = vand.u32 %v1088, 127
      %vm1090 = vcmp.lt.s32.totalorder %v1089, 5
      %vm1091 = vcmp.eq.s32.totalorder %v1089, %v1087
      %vm1092 = vmor %vm1090, %vm1091
      %v1093 = vsel %vm1092, %v1083, -1e+30
      %vm1094 = vcmask 64512
      %v1095 = vsel %vm1094, %v1093, -inf
      %1096 = vmax.xlane.f32.xlu0 %v1095
      %v1097 = vpop.xlane.xlu0 %1096
      %v1098 = vsub.f32 %v1093, %v1097
      %v1099 = vmul.f32 %v1098, 1.442695
      %v1100 = vpow.pop %v1099
      %v1101 = vsel %vm1094, %v1100, 0.0
      %1102 = vadd.xlane.f32.xlu0 %v1101
      %v1103 = vpop.xlane.xlu0 %1102
      %v1104 = vrcp.pop %v1103
      %v1105 = vpack.c.bf16 %v1100, %v1100
      %v1107 = vsel %vm1094, %v1105, 0
      %vm1109 = vcmask 1043456
      %v1111 = vsel %vm1109, %v1072, 0
      %1113 = vmatpush.bf16.msra.mxu0 0
      %1114 = vmatpush.bf16.msra.mxu0 0
      %1115 = vmatpush.bf16.msra.mxu0 0
      %1116 = vmatpush.bf16.msra.mxu0 0
      %1117 = vmatpush.bf16.msra.mxu0 0
      %1118 = vmatpush.bf16.msra.mxu0 0
      %1119 = vmatpush.bf16.msra.mxu0 0
      %1120 = vmatpush.bf16.msra.mxu0 %v1111
      %1121 = vmatmul.bf16.gmra.mxu0 %v1107
      %v1122 = vpop.f32.mrf.mxu0
      %v1123 = vadd.f32 0.0, %v1122
      %v1124 = vpop.f32.mrf.mxu0
      %1125 = vdwg.mxu0
      %v1126 = vmul.f32 %v1123, %v1104
      %v1127 = vpack.c.bf16 %v1126, %v1126
      %v1128 = vld [vmem:[#allocation11] sm:$0xf]
      %v1129 = vld [vmem:[#allocation11 + $0x4] sm:$0xf]
      %v1130 = vld [vmem:[#allocation11 + $0x8] sm:$0xf]
      %v1131 = vld [vmem:[#allocation11 + $0xc] sm:$0xf]
      %v1132 = vld [vmem:[#allocation11 + $0x10] sm:$0xf]
      %v1133 = vld [vmem:[#allocation11 + $0x14] sm:$0xf]
      %v1134 = vld [vmem:[#allocation11 + $0x18] sm:$0xf]
      %v1135 = vld [vmem:[#allocation11 + $0x1c] sm:$0xf]
      %v1136 = vld [vmem:[#allocation11 + $0x20] sm:$0xf]
      %v1137 = vld [vmem:[#allocation11 + $0x24] sm:$0xf]
      %v1138 = vld [vmem:[#allocation11 + $0x28] sm:$0xf]
      %v1139 = vld [vmem:[#allocation11 + $0x2c] sm:$0xf]
      %v1140 = vld [vmem:[#allocation11 + $0x30] sm:$0xf]
      %v1141 = vld [vmem:[#allocation11 + $0x34] sm:$0xf]
      %v1142 = vld [vmem:[#allocation11 + $0x38] sm:$0xf]
      %v1143 = vld [vmem:[#allocation11 + $0x3c] sm:$0xf]
      %v1160 = vunpack.c.l.b16 %v1128
      %v1161 = vunpack.c.l.b16 %v1129
      %v1162 = vunpack.c.l.b16 %v1130
      %v1163 = vunpack.c.l.b16 %v1131
      %v1164 = vunpack.c.l.b16 %v1132
      %v1165 = vunpack.c.l.b16 %v1133
      %v1166 = vunpack.c.l.b16 %v1134
      %v1167 = vunpack.c.l.b16 %v1135
      %v1168 = vunpack.c.l.b16 %v1136
      %v1169 = vunpack.c.l.b16 %v1137
      %v1170 = vunpack.c.l.b16 %v1138
      %v1171 = vunpack.c.l.b16 %v1139
      %v1172 = vunpack.c.l.b16 %v1140
      %v1173 = vunpack.c.l.b16 %v1141
      %v1174 = vunpack.c.l.b16 %v1142
      %v1175 = vunpack.c.l.b16 %v1143
      %v1176 = vpack.c.b16 %v1161, %v1160
      %v1177 = vpack.c.b16 %v1163, %v1162
      %v1178 = vpack.c.b16 %v1165, %v1164
      %v1179 = vpack.c.b16 %v1167, %v1166
      %v1180 = vpack.c.b16 %v1169, %v1168
      %v1181 = vpack.c.b16 %v1171, %v1170
      %v1182 = vpack.c.b16 %v1173, %v1172
      %v1183 = vpack.c.b16 %v1175, %v1174
      %1192 = vmatpush.bf16.msra.mxu0 %v1183
      %1193 = vmatpush.bf16.msra.mxu0 %v1182
      %1194 = vmatpush.bf16.msra.mxu0 %v1181
      %1195 = vmatpush.bf16.msra.mxu0 %v1180
      %1196 = vmatpush.bf16.msra.mxu0 %v1179
      %1197 = vmatpush.bf16.msra.mxu0 %v1178
      %1198 = vmatpush.bf16.msra.mxu0 %v1177
      %1199 = vmatpush.bf16.msra.mxu0 %v1176
      %1200 = vmatmul.bf16.gmra.mxu0 %v1127
      %v1201 = vpop.f32.mrf.mxu0
      %v1202 = vadd.f32 0.0, %v1201
      %v1203 = vpop.f32.mrf.mxu0
      %1204 = vdwg.mxu0
      %v1205 = vadd.f32 %v828, %v1202
      %v1206 = vld [vmem:[%s9] sm:$0x1]
      %v1207 = vld [vmem:[%s10] sm:$0x1]
      %1208 = vadd.xlane.f32.xlu0 %v1205
      %v1209 = vpop.xlane.xlu0 %1208
      %v1210 = vmul.f32 %v1209, %v839
      %v1211 = vmul.f32 %v1205, %v1205
      %1212 = vadd.xlane.f32.xlu0 %v1211
      %v1213 = vpop.xlane.xlu0 %1212
      %v1214 = vmul.f32 %v1213, %v839
      %v1215 = vmul.f32 %v1210, %v1210
      %v1216 = vsub.f32 %v1214, %v1215
      %v1217 = vmax.f32 %v1216, 0.0
      %v1218 = vsub.f32 %v1205, %v1210
      %v1219 = vadd.f32 %v1217, 1e-05
      %v1220 = vrsqrt.pop %v1219
      %v1221 = vmul.f32 %v1220, %v1219
      %v1222 = vmul.f32 %v1221, %v1220
      %v1223 = vmul.f32 0.5, %v1222
      %v1224 = vsub.f32 1.5, %v1223
      %v1225 = vmul.f32 %v1220, %v1224
      %vm1226 = vweird.f32 %v1219
      %vm1227 = vweird.f32 %v1220
      %vm1228 = vmor %vm1226, %vm1227
      %v1229 = vsel %vm1228, %v1220, %v1225
      %v1230 = vmul.f32 %v1218, %v1229
      %v1232 = vperm.slane %v1206, 0
      %v1234 = vmul.f32 %v1230, %v1232
      %v1236 = vperm.slane %v1207, 0
      %v1238 = vadd.f32 %v1234, %v1236
      %v1239 = vpack.c.bf16 %v1238, %v1238
      %v1240 = vld [vmem:[#allocation12] sm:$0xff]
      %v1241 = vld [vmem:[#allocation12 + $0x8] sm:$0xff]
      %v1242 = vld [vmem:[#allocation12 + $0x10] sm:$0xff]
      %v1243 = vld [vmem:[#allocation12 + $0x18] sm:$0xff]
      %v1244 = vld [vmem:[#allocation12 + $0x20] sm:$0xff]
      %v1245 = vld [vmem:[#allocation12 + $0x28] sm:$0xff]
      %v1246 = vld [vmem:[#allocation12 + $0x30] sm:$0xff]
      %v1247 = vld [vmem:[#allocation12 + $0x38] sm:$0xff]
      %v1248 = vld [vmem:[#allocation12 + $0x40] sm:$0xff]
      %v1249 = vld [vmem:[#allocation12 + $0x48] sm:$0xff]
      %v1250 = vld [vmem:[#allocation12 + $0x50] sm:$0xff]
      %v1251 = vld [vmem:[#allocation12 + $0x58] sm:$0xff]
      %v1252 = vld [vmem:[#allocation12 + $0x60] sm:$0xff]
      %v1253 = vld [vmem:[#allocation12 + $0x68] sm:$0xff]
      %v1254 = vld [vmem:[#allocation12 + $0x70] sm:$0xff]
      %v1255 = vld [vmem:[#allocation12 + $0x78] sm:$0xff]
      %v1272 = vunpack.c.l.b16 %v1240
      %v1273 = vunpack.c.h.b16 %v1240
      %v1274 = vunpack.c.l.b16 %v1241
      %v1275 = vunpack.c.h.b16 %v1241
      %v1276 = vunpack.c.l.b16 %v1242
      %v1277 = vunpack.c.h.b16 %v1242
      %v1278 = vunpack.c.l.b16 %v1243
      %v1279 = vunpack.c.h.b16 %v1243
      %v1280 = vunpack.c.l.b16 %v1244
      %v1281 = vunpack.c.h.b16 %v1244
      %v1282 = vunpack.c.l.b16 %v1245
      %v1283 = vunpack.c.h.b16 %v1245
      %v1284 = vunpack.c.l.b16 %v1246
      %v1285 = vunpack.c.h.b16 %v1246
      %v1286 = vunpack.c.l.b16 %v1247
      %v1287 = vunpack.c.h.b16 %v1247
      %v1288 = vunpack.c.l.b16 %v1248
      %v1289 = vunpack.c.h.b16 %v1248
      %v1290 = vunpack.c.l.b16 %v1249
      %v1291 = vunpack.c.h.b16 %v1249
      %v1292 = vunpack.c.l.b16 %v1250
      %v1293 = vunpack.c.h.b16 %v1250
      %v1294 = vunpack.c.l.b16 %v1251
      %v1295 = vunpack.c.h.b16 %v1251
      %v1296 = vunpack.c.l.b16 %v1252
      %v1297 = vunpack.c.h.b16 %v1252
      %v1298 = vunpack.c.l.b16 %v1253
      %v1299 = vunpack.c.h.b16 %v1253
      %v1300 = vunpack.c.l.b16 %v1254
      %v1301 = vunpack.c.h.b16 %v1254
      %v1302 = vunpack.c.l.b16 %v1255
      %v1303 = vunpack.c.h.b16 %v1255
      %v1304 = vpack.c.b16 %v1274, %v1272
      %v1305 = vpack.c.b16 %v1275, %v1273
      %v1306 = vpack.c.b16 %v1278, %v1276
      %v1307 = vpack.c.b16 %v1279, %v1277
      %v1308 = vpack.c.b16 %v1282, %v1280
      %v1309 = vpack.c.b16 %v1283, %v1281
      %v1310 = vpack.c.b16 %v1286, %v1284
      %v1311 = vpack.c.b16 %v1287, %v1285
      %v1312 = vpack.c.b16 %v1290, %v1288
      %v1313 = vpack.c.b16 %v1291, %v1289
      %v1314 = vpack.c.b16 %v1294, %v1292
      %v1315 = vpack.c.b16 %v1295, %v1293
      %v1316 = vpack.c.b16 %v1298, %v1296
      %v1317 = vpack.c.b16 %v1299, %v1297
      %v1318 = vpack.c.b16 %v1302, %v1300
      %v1319 = vpack.c.b16 %v1303, %v1301
      %1336 = vmatpush.bf16.msra.mxu0 %v1318
      %1337 = vmatpush.bf16.msra.mxu0 %v1316
      %1338 = vmatpush.bf16.msra.mxu0 %v1314
      %1339 = vmatpush.bf16.msra.mxu0 %v1312
      %1340 = vmatpush.bf16.msra.mxu0 %v1310
      %1341 = vmatpush.bf16.msra.mxu0 %v1308
      %1342 = vmatpush.bf16.msra.mxu0 %v1306
      %1343 = vmatpush.bf16.msra.mxu0 %v1304
      %1344 = vmatmul.bf16.gmra.mxu0 %v1239
      %v1345 = vpop.f32.mrf.mxu0
      %v1346 = vadd.f32 0.0, %v1345
      %v1347 = vpop.f32.mrf.mxu0
      %1348 = vdwg.mxu0
      %1349 = vmatpush.bf16.msra.mxu0 %v1319
      %1350 = vmatpush.bf16.msra.mxu0 %v1317
      %1351 = vmatpush.bf16.msra.mxu0 %v1315
      %1352 = vmatpush.bf16.msra.mxu0 %v1313
      %1353 = vmatpush.bf16.msra.mxu0 %v1311
      %1354 = vmatpush.bf16.msra.mxu0 %v1309
      %1355 = vmatpush.bf16.msra.mxu0 %v1307
      %1356 = vmatpush.bf16.msra.mxu0 %v1305
      %1357 = vmatmul.bf16.gmra.mxu0 %v1239
      %v1358 = vpop.f32.mrf.mxu0
      %v1359 = vadd.f32 0.0, %v1358
      %v1360 = vpop.f32.mrf.mxu0
      %1361 = vdwg.mxu0
      %v1362 = vmax.f32 %v1346, 0.0
      %v1363 = vmax.f32 %v1359, 0.0
      %v1364 = vpack.c.bf16 %v1362, %v1362
      %v1365 = vpack.c.bf16 %v1363, %v1363
      %v1366 = vld [vmem:[#allocation14] sm:$0xf]
      %v1367 = vld [vmem:[#allocation14 + $0x4] sm:$0xf]
      %v1368 = vld [vmem:[#allocation14 + $0x8] sm:$0xf]
      %v1369 = vld [vmem:[#allocation14 + $0xc] sm:$0xf]
      %v1370 = vld [vmem:[#allocation14 + $0x10] sm:$0xf]
      %v1371 = vld [vmem:[#allocation14 + $0x14] sm:$0xf]
      %v1372 = vld [vmem:[#allocation14 + $0x18] sm:$0xf]
      %v1373 = vld [vmem:[#allocation14 + $0x1c] sm:$0xf]
      %v1374 = vld [vmem:[#allocation14 + $0x20] sm:$0xf]
      %v1375 = vld [vmem:[#allocation14 + $0x24] sm:$0xf]
      %v1376 = vld [vmem:[#allocation14 + $0x28] sm:$0xf]
      %v1377 = vld [vmem:[#allocation14 + $0x2c] sm:$0xf]
      %v1378 = vld [vmem:[#allocation14 + $0x30] sm:$0xf]
      %v1379 = vld [vmem:[#allocation14 + $0x34] sm:$0xf]
      %v1380 = vld [vmem:[#allocation14 + $0x38] sm:$0xf]
      %v1381 = vld [vmem:[#allocation14 + $0x3c] sm:$0xf]
      %v1382 = vld [vmem:[#allocation14 + $0x40] sm:$0xf]
      %v1383 = vld [vmem:[#allocation14 + $0x44] sm:$0xf]
      %v1384 = vld [vmem:[#allocation14 + $0x48] sm:$0xf]
      %v1385 = vld [vmem:[#allocation14 + $0x4c] sm:$0xf]
      %v1386 = vld [vmem:[#allocation14 + $0x50] sm:$0xf]
      %v1387 = vld [vmem:[#allocation14 + $0x54] sm:$0xf]
      %v1388 = vld [vmem:[#allocation14 + $0x58] sm:$0xf]
      %v1389 = vld [vmem:[#allocation14 + $0x5c] sm:$0xf]
      %v1390 = vld [vmem:[#allocation14 + $0x60] sm:$0xf]
      %v1391 = vld [vmem:[#allocation14 + $0x64] sm:$0xf]
      %v1392 = vld [vmem:[#allocation14 + $0x68] sm:$0xf]
      %v1393 = vld [vmem:[#allocation14 + $0x6c] sm:$0xf]
      %v1394 = vld [vmem:[#allocation14 + $0x70] sm:$0xf]
      %v1395 = vld [vmem:[#allocation14 + $0x74] sm:$0xf]
      %v1396 = vld [vmem:[#allocation14 + $0x78] sm:$0xf]
      %v1397 = vld [vmem:[#allocation14 + $0x7c] sm:$0xf]
      %v1430 = vunpack.c.l.b16 %v1366
      %v1431 = vunpack.c.l.b16 %v1367
      %v1432 = vunpack.c.l.b16 %v1368
      %v1433 = vunpack.c.l.b16 %v1369
      %v1434 = vunpack.c.l.b16 %v1370
      %v1435 = vunpack.c.l.b16 %v1371
      %v1436 = vunpack.c.l.b16 %v1372
      %v1437 = vunpack.c.l.b16 %v1373
      %v1438 = vunpack.c.l.b16 %v1374
      %v1439 = vunpack.c.l.b16 %v1375
      %v1440 = vunpack.c.l.b16 %v1376
      %v1441 = vunpack.c.l.b16 %v1377
      %v1442 = vunpack.c.l.b16 %v1378
      %v1443 = vunpack.c.l.b16 %v1379
      %v1444 = vunpack.c.l.b16 %v1380
      %v1445 = vunpack.c.l.b16 %v1381
      %v1446 = vunpack.c.l.b16 %v1382
      %v1447 = vunpack.c.l.b16 %v1383
      %v1448 = vunpack.c.l.b16 %v1384
      %v1449 = vunpack.c.l.b16 %v1385
      %v1450 = vunpack.c.l.b16 %v1386
      %v1451 = vunpack.c.l.b16 %v1387
      %v1452 = vunpack.c.l.b16 %v1388
      %v1453 = vunpack.c.l.b16 %v1389
      %v1454 = vunpack.c.l.b16 %v1390
      %v1455 = vunpack.c.l.b16 %v1391
      %v1456 = vunpack.c.l.b16 %v1392
      %v1457 = vunpack.c.l.b16 %v1393
      %v1458 = vunpack.c.l.b16 %v1394
      %v1459 = vunpack.c.l.b16 %v1395
      %v1460 = vunpack.c.l.b16 %v1396
      %v1461 = vunpack.c.l.b16 %v1397
      %v1462 = vpack.c.b16 %v1431, %v1430
      %v1463 = vpack.c.b16 %v1433, %v1432
      %v1464 = vpack.c.b16 %v1435, %v1434
      %v1465 = vpack.c.b16 %v1437, %v1436
      %v1466 = vpack.c.b16 %v1439, %v1438
      %v1467 = vpack.c.b16 %v1441, %v1440
      %v1468 = vpack.c.b16 %v1443, %v1442
      %v1469 = vpack.c.b16 %v1445, %v1444
      %v1470 = vpack.c.b16 %v1447, %v1446
      %v1471 = vpack.c.b16 %v1449, %v1448
      %v1472 = vpack.c.b16 %v1451, %v1450
      %v1473 = vpack.c.b16 %v1453, %v1452
      %v1474 = vpack.c.b16 %v1455, %v1454
      %v1475 = vpack.c.b16 %v1457, %v1456
      %v1476 = vpack.c.b16 %v1459, %v1458
      %v1477 = vpack.c.b16 %v1461, %v1460
      %1494 = vmatpush.bf16.msra.mxu0 %v1469
      %1495 = vmatpush.bf16.msra.mxu0 %v1468
      %1496 = vmatpush.bf16.msra.mxu0 %v1467
      %1497 = vmatpush.bf16.msra.mxu0 %v1466
      %1498 = vmatpush.bf16.msra.mxu0 %v1465
      %1499 = vmatpush.bf16.msra.mxu0 %v1464
      %1500 = vmatpush.bf16.msra.mxu0 %v1463
      %1501 = vmatpush.bf16.msra.mxu0 %v1462
      %1502 = vmatmul.bf16.gmra.mxu0 %v1364
      %v1503 = vpop.f32.mrf.mxu0
      %v1504 = vadd.f32 0.0, %v1503
      %v1505 = vpop.f32.mrf.mxu0
      %1506 = vdwg.mxu0
      %1507 = vmatpush.bf16.msra.mxu0 %v1477
      %1508 = vmatpush.bf16.msra.mxu0 %v1476
      %1509 = vmatpush.bf16.msra.mxu0 %v1475
      %1510 = vmatpush.bf16.msra.mxu0 %v1474
      %1511 = vmatpush.bf16.msra.mxu0 %v1473
      %1512 = vmatpush.bf16.msra.mxu0 %v1472
      %1513 = vmatpush.bf16.msra.mxu0 %v1471
      %1514 = vmatpush.bf16.msra.mxu0 %v1470
      %1515 = vmatmul.bf16.gmra.mxu0 %v1365
      %v1516 = vpop.f32.mrf.mxu0
      %v1517 = vadd.f32 %v1504, %v1516
      %v1518 = vpop.f32.mrf.mxu0
      %1519 = vdwg.mxu0
      %v1520 = vadd.f32 %v1205, %v1517
      %v1521 = vpack.c.bf16 %v1520, %v1520
      %v1522 = vld [vmem:[#allocation15] sm:$0xf]
      %v1523 = vld [vmem:[#allocation15 + $0x4] sm:$0xf]
      %v1524 = vld [vmem:[#allocation15 + $0x8] sm:$0xf]
      %v1525 = vld [vmem:[#allocation15 + $0xc] sm:$0xf]
      %v1526 = vld [vmem:[#allocation15 + $0x10] sm:$0xf]
      %v1527 = vld [vmem:[#allocation15 + $0x14] sm:$0xf]
      %v1528 = vld [vmem:[#allocation15 + $0x18] sm:$0xf]
      %v1529 = vld [vmem:[#allocation15 + $0x1c] sm:$0xf]
      %v1530 = vld [vmem:[#allocation15 + $0x20] sm:$0xf]
      %v1531 = vld [vmem:[#allocation15 + $0x24] sm:$0xf]
      %v1532 = vld [vmem:[#allocation15 + $0x28] sm:$0xf]
      %v1533 = vld [vmem:[#allocation15 + $0x2c] sm:$0xf]
      %v1534 = vld [vmem:[#allocation15 + $0x30] sm:$0xf]
      %v1535 = vld [vmem:[#allocation15 + $0x34] sm:$0xf]
      %v1536 = vld [vmem:[#allocation15 + $0x38] sm:$0xf]
      %v1537 = vld [vmem:[#allocation15 + $0x3c] sm:$0xf]
      %v1538 = vld [vmem:[%s12] sm:$0x1]
      %v1540 = vperm.slane %v1538, 0
      %v1558 = vunpack.c.l.b16 %v1522
      %v1559 = vunpack.c.l.b16 %v1523
      %v1560 = vunpack.c.l.b16 %v1524
      %v1561 = vunpack.c.l.b16 %v1525
      %v1562 = vunpack.c.l.b16 %v1526
      %v1563 = vunpack.c.l.b16 %v1527
      %v1564 = vunpack.c.l.b16 %v1528
      %v1565 = vunpack.c.l.b16 %v1529
      %v1566 = vunpack.c.l.b16 %v1530
      %v1567 = vunpack.c.l.b16 %v1531
      %v1568 = vunpack.c.l.b16 %v1532
      %v1569 = vunpack.c.l.b16 %v1533
      %v1570 = vunpack.c.l.b16 %v1534
      %v1571 = vunpack.c.l.b16 %v1535
      %v1572 = vunpack.c.l.b16 %v1536
      %v1573 = vunpack.c.l.b16 %v1537
      %v1574 = vpack.c.b16 %v1559, %v1558
      %v1575 = vpack.c.b16 %v1561, %v1560
      %v1576 = vpack.c.b16 %v1563, %v1562
      %v1577 = vpack.c.b16 %v1565, %v1564
      %v1578 = vpack.c.b16 %v1567, %v1566
      %v1579 = vpack.c.b16 %v1569, %v1568
      %v1580 = vpack.c.b16 %v1571, %v1570
      %v1581 = vpack.c.b16 %v1573, %v1572
      %1590 = vmatpush.bf16.msra.mxu0 %v1581
      %1591 = vmatpush.bf16.msra.mxu0 %v1580
      %1592 = vmatpush.bf16.msra.mxu0 %v1579
      %1593 = vmatpush.bf16.msra.mxu0 %v1578
      %1594 = vmatpush.bf16.msra.mxu0 %v1577
      %1595 = vmatpush.bf16.msra.mxu0 %v1576
      %1596 = vmatpush.bf16.msra.mxu0 %v1575
      %1597 = vmatpush.bf16.msra.mxu0 %v1574
      %1598 = vmatmul.bf16.gmra.mxu0 %v1521
      %v1599 = vpop.f32.mrf.mxu0
      %v1600 = vadd.f32 %v1540, %v1599
      %v1601 = vpop.f32.mrf.mxu0
      %1602 = vdwg.mxu0
      %1603 = vst [vmem:[#allocation17] sm:$0xff] %v1600
    $region93: #{tpu_custom_call.1} parent=1 // pred_fallthru
      _
    // Predicated region
    $region94: #{tpu_custom_call.1} parent=1 // pred_check
      _
    $region95: #{tpu_custom_call.1} parent=1 // pred_check_branch
      %1605 = sbr.rel (0) target = $region97
    $region96: #{tpu_custom_call.1} parent=1 // pred_region
      %1607 = vsyncadd [#allocation5], 0
      %s1609 = sshll.u32 [#allocation17], 4
      %s1610 = int_to_ptr.vmem [resolvable:$true] %s1609
      %s1611 = sshll.u32 %s13, 4
      %s1612 = int_to_ptr.hbm [resolvable:$true] %s1611
      %1614 = dma.vmem_to_hbm [thread:$0]  %s1610, 128, %s1612, [#allocation5]
    $region97: #{tpu_custom_call.1} parent=1 // pred_fallthru
      _
    // Predicated region
    $region98: #{tpu_custom_call.1} parent=1 // pred_check
      _
    $region99: #{tpu_custom_call.1} parent=1 // pred_check_branch
      %1616 = sbr.rel (0) target = $region101
    $region100: #{tpu_custom_call.1} parent=1 // pred_region
      %1618 = dma.done [#allocation5], 128
    $region101: #{tpu_custom_call.1} parent=1 // pred_fallthru
      _
    %1619 = vsyncpa [#allocation4], 1
    %1620 = vsyncpa [#allocation7], 1
    %1621 = vsyncpa [#allocation10], 1
    %1622 = vsyncpa [#allocation13], 1
    %1623 = vsyncpa [#allocation16], 1
    %1624 = vsyncpa [#allocation5], 1

</llo_original>
